<compile_context>
chip_gen: v7x
topology: tpu7x:2x2x1
jax: 0.10.0
libtpu: 0.0.40
codegen_flags: <defaults>
</compile_context>

<pallas_src>
import jax
import jax.numpy as jnp
from jax import lax
from jax.experimental import pallas as pl
from jax.experimental.pallas import tpu as pltpu

_NEG_SLOPE = 0.1


# ----------------------------------------------------------------------------
# Pallas kernel: entire forward pass for one batch tile
# ----------------------------------------------------------------------------
def _encoder_kernel(x_ref, m1_ref, b1_ref, m2_ref, b2_ref, wf_ref, bf_ref, out_ref):
    tb = x_ref.shape[0]
    x = x_ref[...]                                            # (tb, 784) bf16, lane-dense

    # ---- conv1 (1->8, 5x5, valid) as ONE Toeplitz matmul ----------------------
    # Patch row m = di*(12*tb) + ih*tb + b covers conv output row i = 2*ih + di;
    # its 140 patch lanes are the contiguous window x784[b, i*28 : i*28+140].
    pieces = [x[:, (2 * ih + di) * 28:(2 * ih + di) * 28 + 140]
              for di in range(2) for ih in range(12)]
    a1 = jnp.concatenate(pieces, axis=0)                      # (24*tb, 140) bf16
    # Output lanes n = dj*128 + (jh*8 + c); lanes 96..127 of each half are zero.
    c1 = jnp.dot(a1, m1_ref[...],
                 preferred_element_type=jnp.float32) + b1_ref[...]   # (24*tb, 256) f32

    # ---- 2x2 max-pool + leaky_relu(0.1): aligned slices only (pure VPU) -------
    w1 = jnp.maximum(c1[:, :128], c1[:, 128:])                # width pool (col parity)
    h1 = jnp.maximum(w1[:12 * tb], w1[12 * tb:])              # height pool (row parity)
    l1 = jnp.where(h1 > 0, h1, _NEG_SLOPE * h1)               # (12*tb, 128) f32
    l1b = l1.astype(jnp.bfloat16)                             # rows (ih, b); lane = jh*8 + c

    # ---- conv2 (8->4, 5x5, valid): 5 accumulated matmuls, zero-copy operands --
    # Operand ki is the 8-aligned row slice l1b[ki*tb : (ki+8)*tb] (rows (i2, b)).
    m2 = m2_ref[...]                                          # (640, 32) bf16
    c2 = b2_ref[...] + jnp.dot(l1b[0:8 * tb, :], m2[0:128, :],
                               preferred_element_type=jnp.float32)
    for ki in range(1, 5):
        c2 = c2 + jnp.dot(l1b[ki * tb:(ki + 8) * tb, :],
                          m2[ki * 128:(ki + 1) * 128, :],
                          preferred_element_type=jnp.float32)  # (8*tb, 32) f32

    # ---- 2x2 max-pool + leaky_relu(0.1) ----------------------------------------
    # Row pool: max of the two consecutive tb-row blocks of each output-row pair.
    r2 = jnp.concatenate(
        [jnp.maximum(c2[(2 * vh) * tb:(2 * vh + 1) * tb, :],
                     c2[(2 * vh + 1) * tb:(2 * vh + 2) * tb, :]) for vh in range(4)],
        axis=0)                                               # (4*tb, 32), rows (vh, b)
    p2 = jnp.maximum(r2[:, :16], r2[:, 16:])                  # col pool -> (4*tb, 16)
    l2 = jnp.where(p2 > 0, p2, _NEG_SLOPE * p2)

    # ---- flatten (vh, wj, co) + Linear(64, 32) ---------------------------------
    flat = jnp.concatenate([l2[v * tb:(v + 1) * tb, :] for v in range(4)], axis=-1)
    out_ref[...] = (jnp.dot(flat, wf_ref[...], preferred_element_type=jnp.float32)
                    + bf_ref[...])


# ----------------------------------------------------------------------------
# One-time weight transformation (hoisted out of the forward path)
# ----------------------------------------------------------------------------
def prepare_params(params):
    """Transform PyTorch-layout weights into kernel layouts. Call once and reuse."""
    w1, b1, w2, b2, wf, bf = params
    f32 = jnp.float32

    # conv1 Toeplitz: rows (ki*28 + col), lanes (dj*128 + jh*8 + c), 32 zero pad
    # lanes per 128-lane half so the width-pool halves are vreg aligned.
    w1t = jnp.transpose(w1[:, 0, :, :].astype(f32), (1, 2, 0))        # (ki, kj, c)
    col = jnp.arange(28)[:, None, None]
    dj = jnp.arange(2)[None, :, None]
    jh = jnp.arange(12)[None, None, :]
    kj = col - (2 * jh + dj)                                          # (28, 2, 12)
    valid = (kj >= 0) & (kj <= 4)
    m1 = w1t[:, jnp.clip(kj, 0, 4), :]                                # (5, 28, 2, 12, 8)
    m1 = jnp.where(valid[None, :, :, :, None], m1, 0.0)
    m1 = m1.reshape(5 * 28, 2, 96)
    m1 = jnp.pad(m1, ((0, 0), (0, 0), (0, 32))).reshape(140, 256).astype(jnp.bfloat16)
    b1h = jnp.pad(jnp.tile(b1.astype(f32), 12), (0, 32))              # (128,)
    b1w = jnp.concatenate([b1h, b1h]).reshape(1, 256)

    # conv2 Toeplitz split by kernel row ki: rows (ki*128 + col*8 + ci),
    # lanes (ej*16 + wj*4 + co); rows with col >= 12 are zero (match l1 pad lanes).
    w2t = jnp.transpose(w2.astype(f32), (2, 3, 1, 0))                 # (ki, kj, ci, co)
    col2 = jnp.arange(12)[:, None, None]
    ej = jnp.arange(2)[None, :, None]
    wj = jnp.arange(4)[None, None, :]
    kj2 = col2 - (2 * wj + ej)                                        # (12, 2, 4)
    valid2 = (kj2 >= 0) & (kj2 <= 4)
    m2 = w2t[:, jnp.clip(kj2, 0, 4), :, :]                            # (5, 12, 2, 4, 8, 4)
    m2 = jnp.where(valid2[None, :, :, :, None, None], m2, 0.0)
    m2 = jnp.transpose(m2, (0, 1, 4, 2, 3, 5))                        # (ki, col, ci, ej, wj, co)
    m2 = m2.reshape(5, 96, 32)
    m2 = jnp.pad(m2, ((0, 0), (0, 32), (0, 0))).reshape(640, 32).astype(jnp.bfloat16)
    b2w = jnp.tile(b2.astype(f32), 8).reshape(1, 32)

    # FC weight: torch flatten order (co, vh, wj) -> kernel flatten (vh, wj, co).
    wfp = jnp.transpose(wf.astype(f32).reshape(32, 4, 4, 4), (2, 3, 1, 0)).reshape(64, 32)
    bfw = bf.astype(f32).reshape(1, 32)
    return m1, b1w, m2, b2w, wfp, bfw


# ----------------------------------------------------------------------------
# Generation-aware batch tile and VMEM limit
# ----------------------------------------------------------------------------
def _tile_and_vmem(batch):
    kind = ""
    try:
        kind = jax.devices()[0].device_kind.lower()
    except Exception:
        pass
    if "v7" in kind:                        # 64 MiB VMEM / TC, 2 TCs per chip
        cap, vmem = 128, 48 * 1024 * 1024
    elif ("v6" in kind) or ("v5" in kind):  # 128 MiB VMEM, 1 TC
        cap, vmem = 512, 96 * 1024 * 1024
    else:                                   # unknown: conservative
        cap, vmem = 256, 64 * 1024 * 1024
    half = -(-batch // 2)                   # ceil(B/2): >=2 grid steps whenever possible
    tb = max(16, min(cap, ((half + 15) // 16) * 16))
    return tb, vmem


# ----------------------------------------------------------------------------
# Forward pass (matches MNIST_Encoder_DSVDD.forward, NCHW input)
# ----------------------------------------------------------------------------
def mnist_encoder_dsvdd_forward(x_nchw, prepared):
    m1, b1w, m2, b2w, wfp, bfw = prepared
    B = x_nchw.shape[0]

    # Lane-dense bf16 input: 784 contiguous lanes per sample.
    x = x_nchw.astype(jnp.bfloat16).reshape(B, 28 * 28)

    tb, vmem_limit = _tile_and_vmem(B)
    n_tiles = -(-B // tb)
    bp = n_tiles * tb
    if bp != B:                             # pad ragged batches (instead of tb=B fallback)
        x = jnp.pad(x, ((0, bp - B), (0, 0)))

    flops = 2 * bp * (24 * 140 * 192 + 8 * 8 * 4 * 200 + 64 * 32)
    bytes_accessed = (bp * (784 * 2 + 32 * 4)
                      + 2 * (140 * 256 + 640 * 32)
                      + 4 * (64 * 32 + 256 + 32 + 32))

    out = pl.pallas_call(
        _encoder_kernel,
        out_shape=jax.ShapeDtypeStruct((bp, 32), jnp.float32),
        grid=(n_tiles,),
        in_specs=[
            pl.BlockSpec((tb, 784), lambda i: (i, 0)),
            # Weights/biases: constant block index -> resident across the grid
            # (~120 KB total, so double-buffering waste is negligible).
            pl.BlockSpec((140, 256), lambda i: (0, 0)),
            pl.BlockSpec((1, 256), lambda i: (0, 0)),
            pl.BlockSpec((640, 32), lambda i: (0, 0)),
            pl.BlockSpec((1, 32), lambda i: (0, 0)),
            pl.BlockSpec((64, 32), lambda i: (0, 0)),
            pl.BlockSpec((1, 32), lambda i: (0, 0)),
        ],
        out_specs=pl.BlockSpec((tb, 32), lambda i: (i, 0)),
        compiler_params=pltpu.CompilerParams(
            dimension_semantics=("parallel",),
            vmem_limit_bytes=vmem_limit,
        ),
        cost_estimate=pl.CostEstimate(
            flops=flops, transcendentals=0, bytes_accessed=bytes_accessed),
    )(x, m1, b1w, m2, b2w, wfp, bfw)
    return out[:B]


# ----------------------------------------------------------------------------
# Pure-JAX f32 reference (for correctness check)
# ----------------------------------------------------------------------------
def reference_forward(x, params):
    w1, b1, w2, b2, wf, bf = params

    def conv(inp, w, b):
        y = lax.conv_general_dilated(inp, w, (1, 1), "VALID",
                                     dimension_numbers=("NCHW", "OIHW", "NCHW"))
        return y + b.reshape(1, -1, 1, 1)

    def maxpool(t):
        return lax.reduce_window(t, -jnp.inf, lax.max,
                                 (1, 1, 2, 2), (1, 1, 2, 2), "VALID")

    def lrelu(t):
        return jnp.where(t > 0, t, _NEG_SLOPE * t)

    l1 = lrelu(maxpool(conv(x, w1, b1)))
    l2 = lrelu(maxpool(conv(l1, w2, b2)))
    flat = l2.reshape(x.shape[0], -1)
    return flat @ wf.T + bf


# ----------------------------------------------------------------------------
# Deterministic parameter init (shapes from the PyTorch __init__)
# ----------------------------------------------------------------------------
def init_params(key):
    ks = jax.random.split(key, 6)
    w1 = jax.random.uniform(ks[0], (8, 1, 5, 5), jnp.float32, -0.2, 0.2)
    b1 = jax.random.uniform(ks[1], (8,), jnp.float32, -0.2, 0.2)
    w2 = jax.random.uniform(ks[2], (4, 8, 5, 5), jnp.float32, -0.07, 0.07)
    b2 = jax.random.uniform(ks[3], (4,), jnp.float32, -0.07, 0.07)
    wf = jax.random.uniform(ks[4], (32, 64), jnp.float32, -0.125, 0.125)
    bf = jax.random.uniform(ks[5], (32,), jnp.float32, -0.125, 0.125)
    return (w1, b1, w2, b2, wf, bf)


if __name__ == "__main__":
    key = jax.random.PRNGKey(0)
    k_x, k_p = jax.random.split(key)
    # MNIST-shaped input: batch=2, 1 channel, 28x28 (required by Linear(64, 32))
    x = jax.random.normal(k_x, (2, 1, 28, 28), jnp.float32)
    params = init_params(k_p)

    prepared = prepare_params(params)              # hoisted one-time weight prep
    fwd = jax.jit(mnist_encoder_dsvdd_forward)

    out = jax.block_until_ready(fwd(x, prepared))
    ref = jax.block_until_ready(reference_forward(x, params))

    assert out.shape == (2, 32)
    max_err = float(jnp.max(jnp.abs(out - ref)))
    # bf16 matmul operands with f32 accumulation: allow a bf16-level tolerance.
    assert jnp.allclose(out, ref, atol=2e-2, rtol=2e-2), (
        f"mismatch vs reference, max abs err = {max_err}")
    print("KERNEL_OK")
</pallas_src>

<mosaic_0001>
module attributes {stable_mosaic.version = 11 : i64} {
  func.func @_encoder_kernel(%arg0: i32, %arg1: memref<16x784xbf16, #tpu.memory_space<vmem>>, %arg2: memref<140x256xbf16, #tpu.memory_space<vmem>>, %arg3: memref<1x256xf32, #tpu.memory_space<vmem>>, %arg4: memref<640x32xbf16, #tpu.memory_space<vmem>>, %arg5: memref<1x32xf32, #tpu.memory_space<vmem>>, %arg6: memref<64x32xf32, #tpu.memory_space<vmem>>, %arg7: memref<1x32xf32, #tpu.memory_space<vmem>>, %arg8: memref<16x32xf32, #tpu.memory_space<vmem>>) attributes {dimension_semantics = [#tpu.dimension_semantics<parallel>], iteration_bounds = array<i64: 1>, scalar_prefetch = 0 : i64, scratch_operands = 0 : i64, tpu.core_type = #tpu.core_type<tc>, window_params = [{transform_indices = @transform_0, window_bounds = array<i64: 16, 784>}, {pipeline_mode = #tpu.pipeline_mode<synchronous>, transform_indices = @transform_1, window_bounds = array<i64: 140, 256>}, {pipeline_mode = #tpu.pipeline_mode<synchronous>, transform_indices = @transform_2, window_bounds = array<i64: 1, 256>}, {pipeline_mode = #tpu.pipeline_mode<synchronous>, transform_indices = @transform_3, window_bounds = array<i64: 640, 32>}, {pipeline_mode = #tpu.pipeline_mode<synchronous>, transform_indices = @transform_4, window_bounds = array<i64: 1, 32>}, {pipeline_mode = #tpu.pipeline_mode<synchronous>, transform_indices = @transform_5, window_bounds = array<i64: 64, 32>}, {pipeline_mode = #tpu.pipeline_mode<synchronous>, transform_indices = @transform_6, window_bounds = array<i64: 1, 32>}, {transform_indices = @transform_7, window_bounds = array<i64: 16, 32>}]} {
    %c0 = arith.constant 0 : index
    %c0_0 = arith.constant 0 : index
    %0 = vector.load %arg1[%c0, %c0_0] : memref<16x784xbf16, #tpu.memory_space<vmem>>, vector<16x784xbf16>
    %1 = vector.extract_strided_slice %0 {offsets = [0, 0], sizes = [16, 140], strides = [1, 1]} : vector<16x784xbf16> to vector<16x140xbf16>
    %2 = vector.extract_strided_slice %0 {offsets = [0, 56], sizes = [16, 140], strides = [1, 1]} : vector<16x784xbf16> to vector<16x140xbf16>
    %3 = vector.extract_strided_slice %0 {offsets = [0, 112], sizes = [16, 140], strides = [1, 1]} : vector<16x784xbf16> to vector<16x140xbf16>
    %4 = vector.extract_strided_slice %0 {offsets = [0, 168], sizes = [16, 140], strides = [1, 1]} : vector<16x784xbf16> to vector<16x140xbf16>
    %5 = vector.extract_strided_slice %0 {offsets = [0, 224], sizes = [16, 140], strides = [1, 1]} : vector<16x784xbf16> to vector<16x140xbf16>
    %6 = vector.extract_strided_slice %0 {offsets = [0, 280], sizes = [16, 140], strides = [1, 1]} : vector<16x784xbf16> to vector<16x140xbf16>
    %7 = vector.extract_strided_slice %0 {offsets = [0, 336], sizes = [16, 140], strides = [1, 1]} : vector<16x784xbf16> to vector<16x140xbf16>
    %8 = vector.extract_strided_slice %0 {offsets = [0, 392], sizes = [16, 140], strides = [1, 1]} : vector<16x784xbf16> to vector<16x140xbf16>
    %9 = vector.extract_strided_slice %0 {offsets = [0, 448], sizes = [16, 140], strides = [1, 1]} : vector<16x784xbf16> to vector<16x140xbf16>
    %10 = vector.extract_strided_slice %0 {offsets = [0, 504], sizes = [16, 140], strides = [1, 1]} : vector<16x784xbf16> to vector<16x140xbf16>
    %11 = vector.extract_strided_slice %0 {offsets = [0, 560], sizes = [16, 140], strides = [1, 1]} : vector<16x784xbf16> to vector<16x140xbf16>
    %12 = vector.extract_strided_slice %0 {offsets = [0, 616], sizes = [16, 140], strides = [1, 1]} : vector<16x784xbf16> to vector<16x140xbf16>
    %13 = vector.extract_strided_slice %0 {offsets = [0, 28], sizes = [16, 140], strides = [1, 1]} : vector<16x784xbf16> to vector<16x140xbf16>
    %14 = vector.extract_strided_slice %0 {offsets = [0, 84], sizes = [16, 140], strides = [1, 1]} : vector<16x784xbf16> to vector<16x140xbf16>
    %15 = vector.extract_strided_slice %0 {offsets = [0, 140], sizes = [16, 140], strides = [1, 1]} : vector<16x784xbf16> to vector<16x140xbf16>
    %16 = vector.extract_strided_slice %0 {offsets = [0, 196], sizes = [16, 140], strides = [1, 1]} : vector<16x784xbf16> to vector<16x140xbf16>
    %17 = vector.extract_strided_slice %0 {offsets = [0, 252], sizes = [16, 140], strides = [1, 1]} : vector<16x784xbf16> to vector<16x140xbf16>
    %18 = vector.extract_strided_slice %0 {offsets = [0, 308], sizes = [16, 140], strides = [1, 1]} : vector<16x784xbf16> to vector<16x140xbf16>
    %19 = vector.extract_strided_slice %0 {offsets = [0, 364], sizes = [16, 140], strides = [1, 1]} : vector<16x784xbf16> to vector<16x140xbf16>
    %20 = vector.extract_strided_slice %0 {offsets = [0, 420], sizes = [16, 140], strides = [1, 1]} : vector<16x784xbf16> to vector<16x140xbf16>
    %21 = vector.extract_strided_slice %0 {offsets = [0, 476], sizes = [16, 140], strides = [1, 1]} : vector<16x784xbf16> to vector<16x140xbf16>
    %22 = vector.extract_strided_slice %0 {offsets = [0, 532], sizes = [16, 140], strides = [1, 1]} : vector<16x784xbf16> to vector<16x140xbf16>
    %23 = vector.extract_strided_slice %0 {offsets = [0, 588], sizes = [16, 140], strides = [1, 1]} : vector<16x784xbf16> to vector<16x140xbf16>
    %24 = vector.extract_strided_slice %0 {offsets = [0, 644], sizes = [16, 140], strides = [1, 1]} : vector<16x784xbf16> to vector<16x140xbf16>
    %25 = tpu.concatenate %1, %2, %3, %4, %5, %6, %7, %8, %9, %10, %11, %12, %13, %14, %15, %16 in 0 : vector<16x140xbf16>, vector<16x140xbf16>, vector<16x140xbf16>, vector<16x140xbf16>, vector<16x140xbf16>, vector<16x140xbf16>, vector<16x140xbf16>, vector<16x140xbf16>, vector<16x140xbf16>, vector<16x140xbf16>, vector<16x140xbf16>, vector<16x140xbf16>, vector<16x140xbf16>, vector<16x140xbf16>, vector<16x140xbf16>, vector<16x140xbf16> -> vector<256x140xbf16>
    %26 = tpu.concatenate %17, %18, %19, %20, %21, %22, %23, %24 in 0 : vector<16x140xbf16>, vector<16x140xbf16>, vector<16x140xbf16>, vector<16x140xbf16>, vector<16x140xbf16>, vector<16x140xbf16>, vector<16x140xbf16>, vector<16x140xbf16> -> vector<128x140xbf16>
    %27 = tpu.concatenate %25, %26 in 0 : vector<256x140xbf16>, vector<128x140xbf16> -> vector<384x140xbf16>
    %c0_1 = arith.constant 0 : index
    %c0_2 = arith.constant 0 : index
    %28 = vector.load %arg2[%c0_1, %c0_2] : memref<140x256xbf16, #tpu.memory_space<vmem>>, vector<140x256xbf16>
    %cst = arith.constant dense<0.000000e+00> : vector<384x256xf32>
    %29 = tpu.matmul %27, %28, %cst {dimension_numbers = #tpu.dot_dimension_numbers<[1], [0], [0], [1], [0, 0, 1, 1], [], []>} : vector<384x140xbf16>, vector<140x256xbf16>, vector<384x256xf32> -> vector<384x256xf32>
    %c0_3 = arith.constant 0 : index
    %c0_4 = arith.constant 0 : index
    %30 = vector.load %arg3[%c0_3, %c0_4] : memref<1x256xf32, #tpu.memory_space<vmem>>, vector<1x256xf32>
    %31 = vector.broadcast %30 : vector<1x256xf32> to vector<384x256xf32>
    %32 = arith.addf %29, %31 : vector<384x256xf32>
    %33 = vector.extract_strided_slice %32 {offsets = [0, 0], sizes = [384, 128], strides = [1, 1]} : vector<384x256xf32> to vector<384x128xf32>
    %34 = vector.extract_strided_slice %32 {offsets = [0, 128], sizes = [384, 128], strides = [1, 1]} : vector<384x256xf32> to vector<384x128xf32>
    %35 = arith.maximumf %33, %34 : vector<384x128xf32>
    %36 = vector.extract_strided_slice %35 {offsets = [0, 0], sizes = [192, 128], strides = [1, 1]} : vector<384x128xf32> to vector<192x128xf32>
    %37 = vector.extract_strided_slice %35 {offsets = [192, 0], sizes = [192, 128], strides = [1, 1]} : vector<384x128xf32> to vector<192x128xf32>
    %38 = arith.maximumf %36, %37 : vector<192x128xf32>
    %cst_5 = arith.constant 0.000000e+00 : f32
    %39 = vector.broadcast %cst_5 : f32 to vector<192x128xf32>
    %40 = arith.cmpf ogt, %38, %39 : vector<192x128xf32>
    %cst_6 = arith.constant 1.000000e-01 : f32
    %41 = vector.broadcast %cst_6 : f32 to vector<192x128xf32>
    %42 = arith.mulf %41, %38 : vector<192x128xf32>
    %43 = arith.select %40, %38, %42 : vector<192x128xi1>, vector<192x128xf32>
    %44 = arith.truncf %43 : vector<192x128xf32> to vector<192x128xbf16>
    %c0_7 = arith.constant 0 : index
    %c0_8 = arith.constant 0 : index
    %45 = vector.load %arg4[%c0_7, %c0_8] : memref<640x32xbf16, #tpu.memory_space<vmem>>, vector<640x32xbf16>
    %c0_9 = arith.constant 0 : index
    %c0_10 = arith.constant 0 : index
    %46 = vector.load %arg5[%c0_9, %c0_10] : memref<1x32xf32, #tpu.memory_space<vmem>>, vector<1x32xf32>
    %47 = vector.extract_strided_slice %44 {offsets = [0, 0], sizes = [128, 128], strides = [1, 1]} : vector<192x128xbf16> to vector<128x128xbf16>
    %48 = vector.extract_strided_slice %45 {offsets = [0, 0], sizes = [128, 32], strides = [1, 1]} : vector<640x32xbf16> to vector<128x32xbf16>
    %cst_11 = arith.constant dense<0.000000e+00> : vector<128x32xf32>
    %49 = tpu.matmul %47, %48, %cst_11 {dimension_numbers = #tpu.dot_dimension_numbers<[1], [0], [0], [1], [0, 0, 1, 1], [], []>} : vector<128x128xbf16>, vector<128x32xbf16>, vector<128x32xf32> -> vector<128x32xf32>
    %50 = vector.broadcast %46 : vector<1x32xf32> to vector<128x32xf32>
    %51 = arith.addf %50, %49 : vector<128x32xf32>
    %52 = vector.extract_strided_slice %44 {offsets = [16, 0], sizes = [128, 128], strides = [1, 1]} : vector<192x128xbf16> to vector<128x128xbf16>
    %53 = vector.extract_strided_slice %45 {offsets = [128, 0], sizes = [128, 32], strides = [1, 1]} : vector<640x32xbf16> to vector<128x32xbf16>
    %cst_12 = arith.constant dense<0.000000e+00> : vector<128x32xf32>
    %54 = tpu.matmul %52, %53, %cst_12 {dimension_numbers = #tpu.dot_dimension_numbers<[1], [0], [0], [1], [0, 0, 1, 1], [], []>} : vector<128x128xbf16>, vector<128x32xbf16>, vector<128x32xf32> -> vector<128x32xf32>
    %55 = arith.addf %51, %54 : vector<128x32xf32>
    %56 = vector.extract_strided_slice %44 {offsets = [32, 0], sizes = [128, 128], strides = [1, 1]} : vector<192x128xbf16> to vector<128x128xbf16>
    %57 = vector.extract_strided_slice %45 {offsets = [256, 0], sizes = [128, 32], strides = [1, 1]} : vector<640x32xbf16> to vector<128x32xbf16>
    %cst_13 = arith.constant dense<0.000000e+00> : vector<128x32xf32>
    %58 = tpu.matmul %56, %57, %cst_13 {dimension_numbers = #tpu.dot_dimension_numbers<[1], [0], [0], [1], [0, 0, 1, 1], [], []>} : vector<128x128xbf16>, vector<128x32xbf16>, vector<128x32xf32> -> vector<128x32xf32>
    %59 = arith.addf %55, %58 : vector<128x32xf32>
    %60 = vector.extract_strided_slice %44 {offsets = [48, 0], sizes = [128, 128], strides = [1, 1]} : vector<192x128xbf16> to vector<128x128xbf16>
    %61 = vector.extract_strided_slice %45 {offsets = [384, 0], sizes = [128, 32], strides = [1, 1]} : vector<640x32xbf16> to vector<128x32xbf16>
    %cst_14 = arith.constant dense<0.000000e+00> : vector<128x32xf32>
    %62 = tpu.matmul %60, %61, %cst_14 {dimension_numbers = #tpu.dot_dimension_numbers<[1], [0], [0], [1], [0, 0, 1, 1], [], []>} : vector<128x128xbf16>, vector<128x32xbf16>, vector<128x32xf32> -> vector<128x32xf32>
    %63 = arith.addf %59, %62 : vector<128x32xf32>
    %64 = vector.extract_strided_slice %44 {offsets = [64, 0], sizes = [128, 128], strides = [1, 1]} : vector<192x128xbf16> to vector<128x128xbf16>
    %65 = vector.extract_strided_slice %45 {offsets = [512, 0], sizes = [128, 32], strides = [1, 1]} : vector<640x32xbf16> to vector<128x32xbf16>
    %cst_15 = arith.constant dense<0.000000e+00> : vector<128x32xf32>
    %66 = tpu.matmul %64, %65, %cst_15 {dimension_numbers = #tpu.dot_dimension_numbers<[1], [0], [0], [1], [0, 0, 1, 1], [], []>} : vector<128x128xbf16>, vector<128x32xbf16>, vector<128x32xf32> -> vector<128x32xf32>
    %67 = arith.addf %63, %66 : vector<128x32xf32>
    %68 = vector.extract_strided_slice %67 {offsets = [0, 0], sizes = [16, 32], strides = [1, 1]} : vector<128x32xf32> to vector<16x32xf32>
    %69 = vector.extract_strided_slice %67 {offsets = [16, 0], sizes = [16, 32], strides = [1, 1]} : vector<128x32xf32> to vector<16x32xf32>
    %70 = arith.maximumf %68, %69 : vector<16x32xf32>
    %71 = vector.extract_strided_slice %67 {offsets = [32, 0], sizes = [16, 32], strides = [1, 1]} : vector<128x32xf32> to vector<16x32xf32>
    %72 = vector.extract_strided_slice %67 {offsets = [48, 0], sizes = [16, 32], strides = [1, 1]} : vector<128x32xf32> to vector<16x32xf32>
    %73 = arith.maximumf %71, %72 : vector<16x32xf32>
    %74 = vector.extract_strided_slice %67 {offsets = [64, 0], sizes = [16, 32], strides = [1, 1]} : vector<128x32xf32> to vector<16x32xf32>
    %75 = vector.extract_strided_slice %67 {offsets = [80, 0], sizes = [16, 32], strides = [1, 1]} : vector<128x32xf32> to vector<16x32xf32>
    %76 = arith.maximumf %74, %75 : vector<16x32xf32>
    %77 = vector.extract_strided_slice %67 {offsets = [96, 0], sizes = [16, 32], strides = [1, 1]} : vector<128x32xf32> to vector<16x32xf32>
    %78 = vector.extract_strided_slice %67 {offsets = [112, 0], sizes = [16, 32], strides = [1, 1]} : vector<128x32xf32> to vector<16x32xf32>
    %79 = arith.maximumf %77, %78 : vector<16x32xf32>
    %80 = tpu.concatenate %70, %73, %76, %79 in 0 : vector<16x32xf32>, vector<16x32xf32>, vector<16x32xf32>, vector<16x32xf32> -> vector<64x32xf32>
    %81 = vector.extract_strided_slice %80 {offsets = [0, 0], sizes = [64, 16], strides = [1, 1]} : vector<64x32xf32> to vector<64x16xf32>
    %82 = vector.extract_strided_slice %80 {offsets = [0, 16], sizes = [64, 16], strides = [1, 1]} : vector<64x32xf32> to vector<64x16xf32>
    %83 = arith.maximumf %81, %82 : vector<64x16xf32>
    %cst_16 = arith.constant 0.000000e+00 : f32
    %84 = vector.broadcast %cst_16 : f32 to vector<64x16xf32>
    %85 = arith.cmpf ogt, %83, %84 : vector<64x16xf32>
    %cst_17 = arith.constant 1.000000e-01 : f32
    %86 = vector.broadcast %cst_17 : f32 to vector<64x16xf32>
    %87 = arith.mulf %86, %83 : vector<64x16xf32>
    %88 = arith.select %85, %83, %87 : vector<64x16xi1>, vector<64x16xf32>
    %89 = vector.extract_strided_slice %88 {offsets = [0, 0], sizes = [16, 16], strides = [1, 1]} : vector<64x16xf32> to vector<16x16xf32>
    %90 = vector.extract_strided_slice %88 {offsets = [16, 0], sizes = [16, 16], strides = [1, 1]} : vector<64x16xf32> to vector<16x16xf32>
    %91 = vector.extract_strided_slice %88 {offsets = [32, 0], sizes = [16, 16], strides = [1, 1]} : vector<64x16xf32> to vector<16x16xf32>
    %92 = vector.extract_strided_slice %88 {offsets = [48, 0], sizes = [16, 16], strides = [1, 1]} : vector<64x16xf32> to vector<16x16xf32>
    %93 = tpu.concatenate %89, %90, %91, %92 in 1 : vector<16x16xf32>, vector<16x16xf32>, vector<16x16xf32>, vector<16x16xf32> -> vector<16x64xf32>
    %c0_18 = arith.constant 0 : index
    %c0_19 = arith.constant 0 : index
    %94 = vector.load %arg6[%c0_18, %c0_19] : memref<64x32xf32, #tpu.memory_space<vmem>>, vector<64x32xf32>
    %cst_20 = arith.constant dense<0.000000e+00> : vector<16x32xf32>
    %95 = tpu.matmul %93, %94, %cst_20 {dimension_numbers = #tpu.dot_dimension_numbers<[1], [0], [0], [1], [0, 0, 1, 1], [], []>} : vector<16x64xf32>, vector<64x32xf32>, vector<16x32xf32> -> vector<16x32xf32>
    %c0_21 = arith.constant 0 : index
    %c0_22 = arith.constant 0 : index
    %96 = vector.load %arg7[%c0_21, %c0_22] : memref<1x32xf32, #tpu.memory_space<vmem>>, vector<1x32xf32>
    %97 = vector.broadcast %96 : vector<1x32xf32> to vector<16x32xf32>
    %98 = arith.addf %95, %97 : vector<16x32xf32>
    %c0_23 = arith.constant 0 : index
    %c0_24 = arith.constant 0 : index
    %99 = vector.load %arg8[%c0_23, %c0_24] : memref<16x32xf32, #tpu.memory_space<vmem>>, vector<16x32xf32>
    tpu.vector_store %arg8[%c0_23, %c0_24], %98 {strides = array<i32>} : memref<16x32xf32, #tpu.memory_space<vmem>>, vector<16x32xf32>,
    return
  }
  func.func @transform_0(%arg0: i32) -> (i32, i32) {
    %c0_i32 = arith.constant 0 : i32
    %c0_i32_0 = arith.constant 0 : i32
    return %arg0, %c0_i32 : i32, i32
  }
  func.func @transform_1(%arg0: i32) -> (i32, i32) {
    %c0_i32 = arith.constant 0 : i32
    %c0_i32_0 = arith.constant 0 : i32
    %c0_i32_1 = arith.constant 0 : i32
    return %c0_i32, %c0_i32_0 : i32, i32
  }
  func.func @transform_2(%arg0: i32) -> (i32, i32) {
    %c0_i32 = arith.constant 0 : i32
    %c0_i32_0 = arith.constant 0 : i32
    %c0_i32_1 = arith.constant 0 : i32
    return %c0_i32, %c0_i32_0 : i32, i32
  }
  func.func @transform_3(%arg0: i32) -> (i32, i32) {
    %c0_i32 = arith.constant 0 : i32
    %c0_i32_0 = arith.constant 0 : i32
    %c0_i32_1 = arith.constant 0 : i32
    return %c0_i32, %c0_i32_0 : i32, i32
  }
  func.func @transform_4(%arg0: i32) -> (i32, i32) {
    %c0_i32 = arith.constant 0 : i32
    %c0_i32_0 = arith.constant 0 : i32
    %c0_i32_1 = arith.constant 0 : i32
    return %c0_i32, %c0_i32_0 : i32, i32
  }
  func.func @transform_5(%arg0: i32) -> (i32, i32) {
    %c0_i32 = arith.constant 0 : i32
    %c0_i32_0 = arith.constant 0 : i32
    %c0_i32_1 = arith.constant 0 : i32
    return %c0_i32, %c0_i32_0 : i32, i32
  }
  func.func @transform_6(%arg0: i32) -> (i32, i32) {
    %c0_i32 = arith.constant 0 : i32
    %c0_i32_0 = arith.constant 0 : i32
    %c0_i32_1 = arith.constant 0 : i32
    return %c0_i32, %c0_i32_0 : i32, i32
  }
  func.func @transform_7(%arg0: i32) -> (i32, i32) {
    %c0_i32 = arith.constant 0 : i32
    %c0_i32_0 = arith.constant 0 : i32
    return %arg0, %c0_i32 : i32, i32
  }
}

</mosaic_0001>

<llo_original>
// kernel: mnist_encoder_dsvdd_forward.1
$region0: #{mnist_encoder_dsvdd_forward.1}
  #allocation0 [shape = 'u32[]', space=smem, size = 0x4, offset = 0x4, fixed_abs, tag = 'smem constant byte address 0x4 - core index']
  #allocation1 [shape = 'u32[144,128]{1,0:T(1,128)}', space=vmem, size = 0x12000, scoped, tag = 'internal scratch']
  %s0 = inlined_call_operand.hbm [shape: bf16[16,784], index: 0, kind: input, shape index: {}]
  %s1 = inlined_call_operand.hbm [shape: bf16[140,256], index: 1, kind: input, shape index: {}]
  %s2 = inlined_call_operand.hbm [shape: f32[1,256], index: 2, kind: input, shape index: {}]
  %s3 = inlined_call_operand.hbm [shape: bf16[640,32], index: 3, kind: input, shape index: {}]
  %s4 = inlined_call_operand.hbm [shape: f32[1,32], index: 4, kind: input, shape index: {}]
  %s5 = inlined_call_operand.hbm [shape: f32[64,32], index: 5, kind: input, shape index: {}]
  %s6 = inlined_call_operand.hbm [shape: f32[1,32], index: 6, kind: input, shape index: {}]
  %s7 = inlined_call_operand.hbm [shape: f32[16,32], index: 7, kind: output, shape index: {}]
  %s8 = sld [smem:[#allocation0]]
  $region66: #{mnist_encoder_dsvdd_forward.1} parent=0
    _
  %s10 = ssub.s32 1, %s8
  %s11 = scalar_select 0, %s10, %s8
  $region1: #{mnist_encoder_dsvdd_forward.1} parent=0
    #allocation2 [shape = 'u8[28672]{0}', space=vmem, size = 0x7000, scoped, tag = 'input window, operand 0, single buffered']
    #allocation3 [shape = 's32[1]{0}', space=sflag, size = 0x4, scoped, tag = 'scoped memory for mnist_encoder_dsvdd_forward.1']
    #allocation4 [shape = 's32[1]{0}', space=sflag, size = 0x4, scoped, tag = 'scoped memory for mnist_encoder_dsvdd_forward.1']
    #allocation5 [shape = 'u8[73728]{0}', space=vmem, size = 0x12000, scoped, tag = 'input window, operand 1, single buffered']
    #allocation6 [shape = 's32[1]{0}', space=sflag, size = 0x4, scoped, tag = 'scoped memory for mnist_encoder_dsvdd_forward.1']
    #allocation7 [shape = 'u8[1024]{0}', space=vmem, size = 0x400, scoped, tag = 'input window, operand 2, single buffered']
    #allocation8 [shape = 'u8[163840]{0}', space=vmem, size = 0x28000, scoped, tag = 'input window, operand 3, single buffered']
    #allocation9 [shape = 's32[1]{0}', space=sflag, size = 0x4, scoped, tag = 'scoped memory for mnist_encoder_dsvdd_forward.1']
    #allocation10 [shape = 'u8[512]{0}', space=vmem, size = 0x400, scoped, tag = 'input window, operand 4, single buffered']
    #allocation11 [shape = 'u8[32768]{0}', space=vmem, size = 0x8000, scoped, tag = 'input window, operand 5, single buffered']
    #allocation12 [shape = 's32[1]{0}', space=sflag, size = 0x4, scoped, tag = 'scoped memory for mnist_encoder_dsvdd_forward.1']
    #allocation13 [shape = 'u8[512]{0}', space=vmem, size = 0x400, scoped, tag = 'input window, operand 6, single buffered']
    #allocation14 [shape = 'u8[8192]{0}', space=vmem, size = 0x2000, scoped, tag = 'output window, operand 0, single buffered']
    %12 = vsyncpa [#allocation3], 0
    %13 = vsyncpa [#allocation6], 0
    %14 = vsyncpa [#allocation9], 0
    %15 = vsyncpa [#allocation12], 0
    %16 = vsyncpa [#allocation4], 0
    // Predicated region
    $region2: #{mnist_encoder_dsvdd_forward.1} parent=1 // pred_check
      _
    $region3: #{mnist_encoder_dsvdd_forward.1} parent=1 // pred_check_branch
      %18 = sbr.rel (0) target = $region5
    $region4: #{mnist_encoder_dsvdd_forward.1} parent=1 // pred_region
      %s20 = ssub.s32 896, 896
      %21 = vsyncadd [#allocation3], %s20
      %s22 = sshll.u32 [#allocation2], 4
      %s23 = int_to_ptr.vmem [resolvable:$true] %s22
      %28 = dma.hbm_to_vmem [thread:$0]  %s0, 896, %s23, [#allocation3], 448, 448, 28
    $region5: #{mnist_encoder_dsvdd_forward.1} parent=1 // pred_fallthru
      _
    // Predicated region
    $region6: #{mnist_encoder_dsvdd_forward.1} parent=1 // pred_check
      _
    $region7: #{mnist_encoder_dsvdd_forward.1} parent=1 // pred_check_branch
      %30 = sbr.rel (0) target = $region9
    $region8: #{mnist_encoder_dsvdd_forward.1} parent=1 // pred_region
      %s32 = ssub.s32 2304, 2304
      %33 = vsyncadd [#allocation6], %s32
      %s34 = sshll.u32 [#allocation5], 4
      %s35 = int_to_ptr.vmem [resolvable:$true] %s34
      %40 = dma.hbm_to_vmem [thread:$0]  %s1, 2304, %s35, [#allocation6], 128, 128, 8
    $region9: #{mnist_encoder_dsvdd_forward.1} parent=1 // pred_fallthru
      _
    // Predicated region
    $region10: #{mnist_encoder_dsvdd_forward.1} parent=1 // pred_check
      _
    $region11: #{mnist_encoder_dsvdd_forward.1} parent=1 // pred_check_branch
      %42 = sbr.rel (0) target = $region13
    $region12: #{mnist_encoder_dsvdd_forward.1} parent=1 // pred_region
      %s44 = ssub.s32 32, 32
      %45 = vsyncadd [#allocation6], %s44
      %s47 = sshll.u32 [#allocation7], 4
      %s48 = int_to_ptr.vmem [resolvable:$true] %s47
      %50 = dma.hbm_to_vmem [thread:$0]  %s2, 32, %s48, [#allocation6]
    $region13: #{mnist_encoder_dsvdd_forward.1} parent=1 // pred_fallthru
      _
    // Predicated region
    $region14: #{mnist_encoder_dsvdd_forward.1} parent=1 // pred_check
      _
    $region15: #{mnist_encoder_dsvdd_forward.1} parent=1 // pred_check_branch
      %52 = sbr.rel (0) target = $region17
    $region16: #{mnist_encoder_dsvdd_forward.1} parent=1 // pred_region
      %s54 = ssub.s32 5120, 5120
      %55 = vsyncadd [#allocation9], %s54
      %s56 = sshll.u32 [#allocation8], 4
      %s57 = int_to_ptr.vmem [resolvable:$true] %s56
      %62 = dma.hbm_to_vmem [thread:$0]  %s3, 5120, %s57, [#allocation9], 64, 64, 4
    $region17: #{mnist_encoder_dsvdd_forward.1} parent=1 // pred_fallthru
      _
    // Predicated region
    $region18: #{mnist_encoder_dsvdd_forward.1} parent=1 // pred_check
      _
    $region19: #{mnist_encoder_dsvdd_forward.1} parent=1 // pred_check_branch
      %64 = sbr.rel (0) target = $region21
    $region20: #{mnist_encoder_dsvdd_forward.1} parent=1 // pred_region
      %s66 = ssub.s32 16, 16
      %67 = vsyncadd [#allocation9], %s66
      %s69 = sshll.u32 [#allocation10], 4
      %s70 = int_to_ptr.vmem [resolvable:$true] %s69
      %72 = dma.hbm_to_vmem [thread:$0]  %s4, 16, %s70, [#allocation9]
    $region21: #{mnist_encoder_dsvdd_forward.1} parent=1 // pred_fallthru
      _
    // Predicated region
    $region22: #{mnist_encoder_dsvdd_forward.1} parent=1 // pred_check
      _
    $region23: #{mnist_encoder_dsvdd_forward.1} parent=1 // pred_check_branch
      %74 = sbr.rel (0) target = $region25
    $region24: #{mnist_encoder_dsvdd_forward.1} parent=1 // pred_region
      %s76 = ssub.s32 1024, 1024
      %77 = vsyncadd [#allocation12], %s76
      %s78 = sshll.u32 [#allocation11], 4
      %s79 = int_to_ptr.vmem [resolvable:$true] %s78
      %84 = dma.hbm_to_vmem [thread:$0]  %s5, 1024, %s79, [#allocation12], 128, 128, 8
    $region25: #{mnist_encoder_dsvdd_forward.1} parent=1 // pred_fallthru
      _
    // Predicated region
    $region26: #{mnist_encoder_dsvdd_forward.1} parent=1 // pred_check
      _
    $region27: #{mnist_encoder_dsvdd_forward.1} parent=1 // pred_check_branch
      %86 = sbr.rel (0) target = $region29
    $region28: #{mnist_encoder_dsvdd_forward.1} parent=1 // pred_region
      %s88 = ssub.s32 16, 16
      %89 = vsyncadd [#allocation12], %s88
      %s91 = sshll.u32 [#allocation13], 4
      %s92 = int_to_ptr.vmem [resolvable:$true] %s91
      %94 = dma.hbm_to_vmem [thread:$0]  %s6, 16, %s92, [#allocation12]
    $region29: #{mnist_encoder_dsvdd_forward.1} parent=1 // pred_fallthru
      _
    // Predicated region
    $region30: #{mnist_encoder_dsvdd_forward.1} parent=1 // pred_check
      _
    $region31: #{mnist_encoder_dsvdd_forward.1} parent=1 // pred_check_branch
      %96 = sbr.rel (0) target = $region33
    $region32: #{mnist_encoder_dsvdd_forward.1} parent=1 // pred_region
      %97 = dma.done [#allocation3], 896
    $region33: #{mnist_encoder_dsvdd_forward.1} parent=1 // pred_fallthru
      _
    // Predicated region
    $region34: #{mnist_encoder_dsvdd_forward.1} parent=1 // pred_check
      _
    $region35: #{mnist_encoder_dsvdd_forward.1} parent=1 // pred_check_branch
      %99 = sbr.rel (0) target = $region37
    $region36: #{mnist_encoder_dsvdd_forward.1} parent=1 // pred_region
      %100 = dma.done [#allocation6], 2304
    $region37: #{mnist_encoder_dsvdd_forward.1} parent=1 // pred_fallthru
      _
    // Predicated region
    $region38: #{mnist_encoder_dsvdd_forward.1} parent=1 // pred_check
      _
    $region39: #{mnist_encoder_dsvdd_forward.1} parent=1 // pred_check_branch
      %102 = sbr.rel (0) target = $region41
    $region40: #{mnist_encoder_dsvdd_forward.1} parent=1 // pred_region
      %103 = dma.done [#allocation6], 32
    $region41: #{mnist_encoder_dsvdd_forward.1} parent=1 // pred_fallthru
      _
    // Predicated region
    $region42: #{mnist_encoder_dsvdd_forward.1} parent=1 // pred_check
      _
    $region43: #{mnist_encoder_dsvdd_forward.1} parent=1 // pred_check_branch
      %105 = sbr.rel (0) target = $region45
    $region44: #{mnist_encoder_dsvdd_forward.1} parent=1 // pred_region
      %106 = dma.done [#allocation9], 5120
    $region45: #{mnist_encoder_dsvdd_forward.1} parent=1 // pred_fallthru
      _
    // Predicated region
    $region46: #{mnist_encoder_dsvdd_forward.1} parent=1 // pred_check
      _
    $region47: #{mnist_encoder_dsvdd_forward.1} parent=1 // pred_check_branch
      %108 = sbr.rel (0) target = $region49
    $region48: #{mnist_encoder_dsvdd_forward.1} parent=1 // pred_region
      %109 = dma.done [#allocation9], 16
    $region49: #{mnist_encoder_dsvdd_forward.1} parent=1 // pred_fallthru
      _
    // Predicated region
    $region50: #{mnist_encoder_dsvdd_forward.1} parent=1 // pred_check
      _
    $region51: #{mnist_encoder_dsvdd_forward.1} parent=1 // pred_check_branch
      %111 = sbr.rel (0) target = $region53
    $region52: #{mnist_encoder_dsvdd_forward.1} parent=1 // pred_region
      %112 = dma.done [#allocation12], 1024
    $region53: #{mnist_encoder_dsvdd_forward.1} parent=1 // pred_fallthru
      _
    // Predicated region
    $region54: #{mnist_encoder_dsvdd_forward.1} parent=1 // pred_check
      _
    $region55: #{mnist_encoder_dsvdd_forward.1} parent=1 // pred_check_branch
      %114 = sbr.rel (0) target = $region57
    $region56: #{mnist_encoder_dsvdd_forward.1} parent=1 // pred_region
      %115 = dma.done [#allocation12], 16
    $region57: #{mnist_encoder_dsvdd_forward.1} parent=1 // pred_fallthru
      _
    %v117 = vld [vmem:[#allocation2] sm:$0xff]
    %v118 = vld [vmem:[#allocation2 + $0x8] sm:$0xff]
    %v119 = vld [vmem:[#allocation2 + $0x10] sm:$0xff]
    %v120 = vld [vmem:[#allocation2 + $0x18] sm:$0xf]
    %v121 = vld [vmem:[#allocation2 + $0x1c] sm:$0xff]
    %v122 = vld [vmem:[#allocation2 + $0x24] sm:$0xff]
    %v123 = vld [vmem:[#allocation2 + $0x2c] sm:$0xff]
    %v124 = vld [vmem:[#allocation2 + $0x34] sm:$0xf]
    %v127 = vunpack.c.l.b16 %v117
    %v128 = vunpack.c.h.b16 %v117
    %v129 = vunpack.c.l.b16 %v121
    %v130 = vunpack.c.h.b16 %v121
    %v131 = vpack.c.b16 %v129, %v127
    %v132 = vpack.c.b16 %v130, %v128
    %134 = vrot.lane.b32.xlu0 %v131, 72
    %v135 = vpop.permute.xlu0 %134
    %136 = vrot.lane.b32.xlu0 %v132, 72
    %v137 = vpop.permute.xlu0 %136
    %vm138 = vcmask 588800
    %v139 = vsel %vm138, %v135, %v137
    %141 = vrot.lane.b32.xlu0 %v131, 16
    %v142 = vpop.permute.xlu0 %141
    %143 = vrot.lane.b32.xlu0 %v132, 16
    %v144 = vpop.permute.xlu0 %143
    %vm145 = vcmask 130048
    %v146 = vsel %vm145, %v142, %v144
    %v150 = vunpack.c.l.b16 %v118
    %v151 = vunpack.c.l.b16 %v122
    %v152 = vpack.c.b16 %v151, %v150
    %153 = vrot.lane.b32.xlu0 %v132, 88
    %v154 = vpop.permute.xlu0 %153
    %155 = vrot.lane.b32.xlu0 %v152, 88
    %v156 = vpop.permute.xlu0 %155
    %vm157 = vcmask 719872
    %v158 = vsel %vm157, %v154, %v156
    %160 = vrot.lane.b32.xlu0 %v132, 32
    %v161 = vpop.permute.xlu0 %160
    %162 = vrot.lane.b32.xlu0 %v152, 32
    %v163 = vpop.permute.xlu0 %162
    %vm164 = vcmask 261120
    %v165 = vsel %vm164, %v161, %v163
    %v167 = vunpack.c.h.b16 %v118
    %v168 = vunpack.c.h.b16 %v122
    %v169 = vpack.c.b16 %v168, %v167
    %170 = vrot.lane.b32.xlu0 %v152, 104
    %v171 = vpop.permute.xlu0 %170
    %172 = vrot.lane.b32.xlu0 %v169, 104
    %v173 = vpop.permute.xlu0 %172
    %vm174 = vcmask 850944
    %v175 = vsel %vm174, %v171, %v173
    %177 = vrot.lane.b32.xlu0 %v152, 48
    %v178 = vpop.permute.xlu0 %177
    %179 = vrot.lane.b32.xlu0 %v169, 48
    %v180 = vpop.permute.xlu0 %179
    %vm181 = vcmask 392192
    %v182 = vsel %vm181, %v178, %v180
    %v186 = vunpack.c.l.b16 %v119
    %v187 = vunpack.c.l.b16 %v123
    %v188 = vpack.c.b16 %v187, %v186
    %189 = vrot.lane.b32.xlu0 %v169, 120
    %v190 = vpop.permute.xlu0 %189
    %191 = vrot.lane.b32.xlu0 %v188, 120
    %v192 = vpop.permute.xlu0 %191
    %vm193 = vcmask 982016
    %v194 = vsel %vm193, %v190, %v192
    %196 = vrot.lane.b32.xlu0 %v169, 64
    %v197 = vpop.permute.xlu0 %196
    %198 = vrot.lane.b32.xlu0 %v188, 64
    %v199 = vpop.permute.xlu0 %198
    %vm200 = vcmask 523264
    %v201 = vsel %vm200, %v197, %v199
    %v203 = vunpack.c.h.b16 %v119
    %v204 = vunpack.c.h.b16 %v123
    %v205 = vpack.c.b16 %v204, %v203
    %206 = vrot.lane.b32.xlu0 %v169, 8
    %v207 = vpop.permute.xlu0 %206
    %208 = vrot.lane.b32.xlu0 %v188, 8
    %v209 = vpop.permute.xlu0 %208
    %210 = vrot.lane.b32.xlu0 %v205, 8
    %v211 = vpop.permute.xlu0 %210
    %vm212 = vcmask 64512
    %v213 = vsel %vm212, %v207, %v209
    %v214 = vsel %vm212, %v209, %v211
    %216 = vrot.lane.b32.xlu0 %v188, 80
    %v217 = vpop.permute.xlu0 %216
    %218 = vrot.lane.b32.xlu0 %v205, 80
    %v219 = vpop.permute.xlu0 %218
    %vm220 = vcmask 654336
    %v221 = vsel %vm220, %v217, %v219
    %223 = vrot.lane.b32.xlu0 %v188, 24
    %v224 = vpop.permute.xlu0 %223
    %225 = vrot.lane.b32.xlu0 %v205, 24
    %v226 = vpop.permute.xlu0 %225
    %vm227 = vcmask 195584
    %v228 = vsel %vm227, %v224, %v226
    %230 = vrot.lane.b32.xlu0 %v131, 100
    %v231 = vpop.permute.xlu0 %230
    %232 = vrot.lane.b32.xlu0 %v132, 100
    %v233 = vpop.permute.xlu0 %232
    %vm234 = vcmask 818176
    %v235 = vsel %vm234, %v231, %v233
    %237 = vrot.lane.b32.xlu0 %v131, 44
    %v238 = vpop.permute.xlu0 %237
    %239 = vrot.lane.b32.xlu0 %v132, 44
    %v240 = vpop.permute.xlu0 %239
    %vm241 = vcmask 359424
    %v242 = vsel %vm241, %v238, %v240
    %244 = vrot.lane.b32.xlu0 %v132, 116
    %v245 = vpop.permute.xlu0 %244
    %246 = vrot.lane.b32.xlu0 %v152, 116
    %v247 = vpop.permute.xlu0 %246
    %vm248 = vcmask 949248
    %v249 = vsel %vm248, %v245, %v247
    %251 = vrot.lane.b32.xlu0 %v132, 60
    %v252 = vpop.permute.xlu0 %251
    %253 = vrot.lane.b32.xlu0 %v152, 60
    %v254 = vpop.permute.xlu0 %253
    %vm255 = vcmask 490496
    %v256 = vsel %vm255, %v252, %v254
    %258 = vrot.lane.b32.xlu0 %v132, 4
    %v259 = vpop.permute.xlu0 %258
    %260 = vrot.lane.b32.xlu0 %v152, 4
    %v261 = vpop.permute.xlu0 %260
    %262 = vrot.lane.b32.xlu0 %v169, 4
    %v263 = vpop.permute.xlu0 %262
    %vm264 = vcmask 31744
    %v265 = vsel %vm264, %v259, %v261
    %v266 = vsel %vm264, %v261, %v263
    %268 = vrot.lane.b32.xlu0 %v152, 76
    %v269 = vpop.permute.xlu0 %268
    %270 = vrot.lane.b32.xlu0 %v169, 76
    %v271 = vpop.permute.xlu0 %270
    %vm272 = vcmask 621568
    %v273 = vsel %vm272, %v269, %v271
    %275 = vrot.lane.b32.xlu0 %v152, 20
    %v276 = vpop.permute.xlu0 %275
    %277 = vrot.lane.b32.xlu0 %v169, 20
    %v278 = vpop.permute.xlu0 %277
    %vm279 = vcmask 162816
    %v280 = vsel %vm279, %v276, %v278
    %282 = vrot.lane.b32.xlu0 %v169, 92
    %v283 = vpop.permute.xlu0 %282
    %284 = vrot.lane.b32.xlu0 %v188, 92
    %v285 = vpop.permute.xlu0 %284
    %vm286 = vcmask 752640
    %v287 = vsel %vm286, %v283, %v285
    %289 = vrot.lane.b32.xlu0 %v169, 36
    %v290 = vpop.permute.xlu0 %289
    %291 = vrot.lane.b32.xlu0 %v188, 36
    %v292 = vpop.permute.xlu0 %291
    %vm293 = vcmask 293888
    %v294 = vsel %vm293, %v290, %v292
    %296 = vrot.lane.b32.xlu0 %v188, 108
    %v297 = vpop.permute.xlu0 %296
    %298 = vrot.lane.b32.xlu0 %v205, 108
    %v299 = vpop.permute.xlu0 %298
    %vm300 = vcmask 883712
    %v301 = vsel %vm300, %v297, %v299
    %303 = vrot.lane.b32.xlu0 %v188, 52
    %v304 = vpop.permute.xlu0 %303
    %305 = vrot.lane.b32.xlu0 %v205, 52
    %v306 = vpop.permute.xlu0 %305
    %vm307 = vcmask 424960
    %v308 = vsel %vm307, %v304, %v306
    %v312 = vunpack.c.l.b16 %v120
    %v313 = vunpack.c.l.b16 %v124
    %v314 = vpack.c.b16 %v313, %v312
    %315 = vrot.lane.b32.xlu0 %v205, 124
    %v316 = vpop.permute.xlu0 %315
    %317 = vrot.lane.b32.xlu0 %v314, 124
    %v318 = vpop.permute.xlu0 %317
    %vm319 = vcmask 1014784
    %v320 = vsel %vm319, %v316, %v318
    %v322 = vld [vmem:[#allocation5] sm:$0xff]
    %v323 = vld [vmem:[#allocation5 + $0x8] sm:$0xff]
    %v324 = vld [vmem:[#allocation5 + $0x10] sm:$0xff]
    %v325 = vld [vmem:[#allocation5 + $0x18] sm:$0xff]
    %v326 = vld [vmem:[#allocation5 + $0x20] sm:$0xff]
    %v327 = vld [vmem:[#allocation5 + $0x28] sm:$0xff]
    %v328 = vld [vmem:[#allocation5 + $0x30] sm:$0xff]
    %v329 = vld [vmem:[#allocation5 + $0x38] sm:$0xff]
    %v330 = vld [vmem:[#allocation5 + $0x40] sm:$0xff]
    %v331 = vld [vmem:[#allocation5 + $0x48] sm:$0xff]
    %v332 = vld [vmem:[#allocation5 + $0x50] sm:$0xff]
    %v333 = vld [vmem:[#allocation5 + $0x58] sm:$0xff]
    %v334 = vld [vmem:[#allocation5 + $0x60] sm:$0xff]
    %v335 = vld [vmem:[#allocation5 + $0x68] sm:$0xff]
    %v336 = vld [vmem:[#allocation5 + $0x70] sm:$0xff]
    %v337 = vld [vmem:[#allocation5 + $0x78] sm:$0xff]
    %v338 = vld [vmem:[#allocation5 + $0x80] sm:$0xff]
    %v339 = vld [vmem:[#allocation5 + $0x88] sm:$0x33]
    %v340 = vld [vmem:[#allocation7] sm:$0x3]
    %v342 = vlaneseq
    %v343 = vshrl.u32 %v342, 7
    %v344 = vsub.s32 0, %v343
    %v345 = vrot.slane %v340, %v344
    %v346 = vlaneseq
    %v347 = vshrl.u32 %v346, 7
    %v348 = vsub.s32 1, %v347
    %v349 = vrot.slane %v340, %v348
    %v370 = vunpack.c.l.b16 %v322
    %v371 = vunpack.c.h.b16 %v322
    %v372 = vunpack.c.l.b16 %v323
    %v373 = vunpack.c.h.b16 %v323
    %v374 = vunpack.c.l.b16 %v324
    %v375 = vunpack.c.h.b16 %v324
    %v376 = vunpack.c.l.b16 %v325
    %v377 = vunpack.c.h.b16 %v325
    %v378 = vunpack.c.l.b16 %v326
    %v379 = vunpack.c.h.b16 %v326
    %v380 = vunpack.c.l.b16 %v327
    %v381 = vunpack.c.h.b16 %v327
    %v382 = vunpack.c.l.b16 %v328
    %v383 = vunpack.c.h.b16 %v328
    %v384 = vunpack.c.l.b16 %v329
    %v385 = vunpack.c.h.b16 %v329
    %v386 = vunpack.c.l.b16 %v330
    %v387 = vunpack.c.h.b16 %v330
    %v388 = vunpack.c.l.b16 %v331
    %v389 = vunpack.c.h.b16 %v331
    %v390 = vunpack.c.l.b16 %v332
    %v391 = vunpack.c.h.b16 %v332
    %v392 = vunpack.c.l.b16 %v333
    %v393 = vunpack.c.h.b16 %v333
    %v394 = vunpack.c.l.b16 %v334
    %v395 = vunpack.c.h.b16 %v334
    %v396 = vunpack.c.l.b16 %v335
    %v397 = vunpack.c.h.b16 %v335
    %v398 = vunpack.c.l.b16 %v336
    %v399 = vunpack.c.h.b16 %v336
    %v400 = vunpack.c.l.b16 %v337
    %v401 = vunpack.c.h.b16 %v337
    %v402 = vunpack.c.l.b16 %v338
    %v403 = vunpack.c.h.b16 %v338
    %v404 = vunpack.c.l.b16 %v339
    %v405 = vunpack.c.h.b16 %v339
    %v406 = vpack.c.b16 %v372, %v370
    %v407 = vpack.c.b16 %v373, %v371
    %v408 = vpack.c.b16 %v376, %v374
    %v409 = vpack.c.b16 %v377, %v375
    %v410 = vpack.c.b16 %v380, %v378
    %v411 = vpack.c.b16 %v381, %v379
    %v412 = vpack.c.b16 %v384, %v382
    %v413 = vpack.c.b16 %v385, %v383
    %v414 = vpack.c.b16 %v388, %v386
    %v415 = vpack.c.b16 %v389, %v387
    %v416 = vpack.c.b16 %v392, %v390
    %v417 = vpack.c.b16 %v393, %v391
    %v418 = vpack.c.b16 %v396, %v394
    %v419 = vpack.c.b16 %v397, %v395
    %v420 = vpack.c.b16 %v400, %v398
    %v421 = vpack.c.b16 %v401, %v399
    %v422 = vpack.c.b16 %v404, %v402
    %v423 = vpack.c.b16 %v405, %v403
    %vm440 = vcmask 97280
    %v442 = vsel %vm440, %v132, 0
    %v445 = vsel %vm440, %v137, 0
    %v448 = vsel %vm440, %v144, 0
    %v451 = vsel %vm440, %v156, 0
    %v454 = vsel %vm440, %v163, 0
    %v457 = vsel %vm440, %v173, 0
    %v460 = vsel %vm440, %v180, 0
    %v463 = vsel %vm440, %v192, 0
    %v466 = vsel %vm440, %v199, 0
    %v469 = vsel %vm440, %v214, 0
    %v472 = vsel %vm440, %v219, 0
    %v475 = vsel %vm440, %v226, 0
    %v478 = vsel %vm440, %v233, 0
    %v481 = vsel %vm440, %v240, 0
    %v484 = vsel %vm440, %v247, 0
    %v487 = vsel %vm440, %v254, 0
    %v490 = vsel %vm440, %v266, 0
    %v493 = vsel %vm440, %v271, 0
    %v496 = vsel %vm440, %v278, 0
    %v499 = vsel %vm440, %v285, 0
    %v502 = vsel %vm440, %v292, 0
    %v505 = vsel %vm440, %v299, 0
    %v508 = vsel %vm440, %v306, 0
    %v511 = vsel %vm440, %v318, 0
    %vm513 = vcmask 1045504
    %v515 = vsel %vm513, %v422, 0
    %v518 = vsel %vm513, %v423, 0
    %520 = vmatprep.subr.bf16.mxu0 %v407
    %521 = vmatpush1.bf16.msra.mxu0 %v406
    %522 = vmatprep.subr.bf16.mxu0 %v409
    %523 = vmatpush1.bf16.msra.mxu0 %v408
    %524 = vmatprep.subr.bf16.mxu0 %v411
    %525 = vmatpush1.bf16.msra.mxu0 %v410
    %526 = vmatprep.subr.bf16.mxu0 %v413
    %527 = vmatpush1.bf16.msra.mxu0 %v412
    %528 = vmatprep.subr.bf16.mxu0 %v415
    %529 = vmatpush1.bf16.msra.mxu0 %v414
    %530 = vmatprep.subr.bf16.mxu0 %v417
    %531 = vmatpush1.bf16.msra.mxu0 %v416
    %532 = vmatprep.subr.bf16.mxu0 %v419
    %533 = vmatpush1.bf16.msra.mxu0 %v418
    %534 = vmatprep.subr.bf16.mxu0 %v421
    %535 = vmatpush1.bf16.msra.mxu0 %v420
    %536 = vmatprep.subr.bf16.mxu0 %v518
    %537 = vmatpush1.bf16.msra.mxu0 %v515
    %538 = vmatprep.subr.bf16.mxu0 0
    %539 = vmatpush1.bf16.msra.mxu0 0
    %540 = vmatprep.subr.bf16.mxu0 0
    %541 = vmatpush1.bf16.msra.mxu0 0
    %542 = vmatprep.subr.bf16.mxu0 0
    %543 = vmatpush1.bf16.msra.mxu0 0
    %544 = vmatprep.subr.bf16.mxu0 0
    %545 = vmatpush1.bf16.msra.mxu0 0
    %546 = vmatprep.subr.bf16.mxu0 0
    %547 = vmatpush1.bf16.msra.mxu0 0
    %548 = vmatprep.subr.bf16.mxu0 0
    %549 = vmatpush1.bf16.msra.mxu0 0
    %550 = vmatprep.subr.bf16.mxu0 0
    %551 = vmatpush1.bf16.msra.mxu0 0
    %552 = vmatprep.mubr.bf16.mxu0 %v442
    %553 = vmatmul.mubr.bf16.gmra.mrb[0].mxu0 %v131
    %v554 = vpop.f32.mrb[0].mxu0
    %v555 = vadd.f32 %v345, %v554
    %v556 = vpop.f32.mrb[0].mxu0
    %v557 = vadd.f32 %v349, %v556
    %v558 = vpop.f32.mrb[0].mxu0
    %v559 = vadd.f32 %v345, %v558
    %v560 = vpop.f32.mrb[0].mxu0
    %v561 = vadd.f32 %v349, %v560
    %562 = vmatprep.mubr.bf16.mxu0 %v445
    %563 = vmatmul.mubr.bf16.gmra.mrb[0].mxu0 %v139
    %v564 = vpop.f32.mrb[0].mxu0
    %v565 = vadd.f32 %v345, %v564
    %v566 = vpop.f32.mrb[0].mxu0
    %v567 = vadd.f32 %v349, %v566
    %v568 = vpop.f32.mrb[0].mxu0
    %v569 = vadd.f32 %v345, %v568
    %v570 = vpop.f32.mrb[0].mxu0
    %v571 = vadd.f32 %v349, %v570
    %572 = vmatprep.mubr.bf16.mxu0 %v448
    %573 = vmatmul.mubr.bf16.gmra.mrb[0].mxu0 %v146
    %v574 = vpop.f32.mrb[0].mxu0
    %v575 = vadd.f32 %v345, %v574
    %v576 = vpop.f32.mrb[0].mxu0
    %v577 = vadd.f32 %v349, %v576
    %v578 = vpop.f32.mrb[0].mxu0
    %v579 = vadd.f32 %v345, %v578
    %v580 = vpop.f32.mrb[0].mxu0
    %v581 = vadd.f32 %v349, %v580
    %582 = vmatprep.mubr.bf16.mxu0 %v451
    %583 = vmatmul.mubr.bf16.gmra.mrb[0].mxu0 %v158
    %v584 = vpop.f32.mrb[0].mxu0
    %v585 = vadd.f32 %v345, %v584
    %v586 = vpop.f32.mrb[0].mxu0
    %v587 = vadd.f32 %v349, %v586
    %v588 = vpop.f32.mrb[0].mxu0
    %v589 = vadd.f32 %v345, %v588
    %v590 = vpop.f32.mrb[0].mxu0
    %v591 = vadd.f32 %v349, %v590
    %592 = vmatprep.mubr.bf16.mxu0 %v454
    %593 = vmatmul.mubr.bf16.gmra.mrb[0].mxu0 %v165
    %v594 = vpop.f32.mrb[0].mxu0
    %v595 = vadd.f32 %v345, %v594
    %v596 = vpop.f32.mrb[0].mxu0
    %v597 = vadd.f32 %v349, %v596
    %v598 = vpop.f32.mrb[0].mxu0
    %v599 = vadd.f32 %v345, %v598
    %v600 = vpop.f32.mrb[0].mxu0
    %v601 = vadd.f32 %v349, %v600
    %602 = vmatprep.mubr.bf16.mxu0 %v457
    %603 = vmatmul.mubr.bf16.gmra.mrb[0].mxu0 %v175
    %v604 = vpop.f32.mrb[0].mxu0
    %v605 = vadd.f32 %v345, %v604
    %v606 = vpop.f32.mrb[0].mxu0
    %v607 = vadd.f32 %v349, %v606
    %v608 = vpop.f32.mrb[0].mxu0
    %v609 = vadd.f32 %v345, %v608
    %v610 = vpop.f32.mrb[0].mxu0
    %v611 = vadd.f32 %v349, %v610
    %612 = vmatprep.mubr.bf16.mxu0 %v460
    %613 = vmatmul.mubr.bf16.gmra.mrb[0].mxu0 %v182
    %v614 = vpop.f32.mrb[0].mxu0
    %v615 = vadd.f32 %v345, %v614
    %v616 = vpop.f32.mrb[0].mxu0
    %v617 = vadd.f32 %v349, %v616
    %v618 = vpop.f32.mrb[0].mxu0
    %v619 = vadd.f32 %v345, %v618
    %v620 = vpop.f32.mrb[0].mxu0
    %v621 = vadd.f32 %v349, %v620
    %622 = vmatprep.mubr.bf16.mxu0 %v463
    %623 = vmatmul.mubr.bf16.gmra.mrb[0].mxu0 %v194
    %v624 = vpop.f32.mrb[0].mxu0
    %v625 = vadd.f32 %v345, %v624
    %v626 = vpop.f32.mrb[0].mxu0
    %v627 = vadd.f32 %v349, %v626
    %v628 = vpop.f32.mrb[0].mxu0
    %v629 = vadd.f32 %v345, %v628
    %v630 = vpop.f32.mrb[0].mxu0
    %v631 = vadd.f32 %v349, %v630
    %632 = vmatprep.mubr.bf16.mxu0 %v466
    %633 = vmatmul.mubr.bf16.gmra.mrb[0].mxu0 %v201
    %v634 = vpop.f32.mrb[0].mxu0
    %v635 = vadd.f32 %v345, %v634
    %v636 = vpop.f32.mrb[0].mxu0
    %v637 = vadd.f32 %v349, %v636
    %v638 = vpop.f32.mrb[0].mxu0
    %v639 = vadd.f32 %v345, %v638
    %v640 = vpop.f32.mrb[0].mxu0
    %v641 = vadd.f32 %v349, %v640
    %642 = vmatprep.mubr.bf16.mxu0 %v469
    %643 = vmatmul.mubr.bf16.gmra.mrb[0].mxu0 %v213
    %v644 = vpop.f32.mrb[0].mxu0
    %v645 = vadd.f32 %v345, %v644
    %v646 = vpop.f32.mrb[0].mxu0
    %v647 = vadd.f32 %v349, %v646
    %v648 = vpop.f32.mrb[0].mxu0
    %v649 = vadd.f32 %v345, %v648
    %v650 = vpop.f32.mrb[0].mxu0
    %v651 = vadd.f32 %v349, %v650
    %652 = vmatprep.mubr.bf16.mxu0 %v472
    %653 = vmatmul.mubr.bf16.gmra.mrb[0].mxu0 %v221
    %v654 = vpop.f32.mrb[0].mxu0
    %v655 = vadd.f32 %v345, %v654
    %v656 = vpop.f32.mrb[0].mxu0
    %v657 = vadd.f32 %v349, %v656
    %v658 = vpop.f32.mrb[0].mxu0
    %v659 = vadd.f32 %v345, %v658
    %v660 = vpop.f32.mrb[0].mxu0
    %v661 = vadd.f32 %v349, %v660
    %662 = vmatprep.mubr.bf16.mxu0 %v475
    %663 = vmatmul.mubr.bf16.gmra.mrb[0].mxu0 %v228
    %v664 = vpop.f32.mrb[0].mxu0
    %v665 = vadd.f32 %v345, %v664
    %v666 = vpop.f32.mrb[0].mxu0
    %v667 = vadd.f32 %v349, %v666
    %v668 = vpop.f32.mrb[0].mxu0
    %v669 = vadd.f32 %v345, %v668
    %v670 = vpop.f32.mrb[0].mxu0
    %v671 = vadd.f32 %v349, %v670
    %672 = vmatprep.mubr.bf16.mxu0 %v478
    %673 = vmatmul.mubr.bf16.gmra.mrb[0].mxu0 %v235
    %v674 = vpop.f32.mrb[0].mxu0
    %v675 = vadd.f32 %v345, %v674
    %v676 = vpop.f32.mrb[0].mxu0
    %v677 = vadd.f32 %v349, %v676
    %v678 = vpop.f32.mrb[0].mxu0
    %v679 = vadd.f32 %v345, %v678
    %v680 = vpop.f32.mrb[0].mxu0
    %v681 = vadd.f32 %v349, %v680
    %682 = vmatprep.mubr.bf16.mxu0 %v481
    %683 = vmatmul.mubr.bf16.gmra.mrb[0].mxu0 %v242
    %v684 = vpop.f32.mrb[0].mxu0
    %v685 = vadd.f32 %v345, %v684
    %v686 = vpop.f32.mrb[0].mxu0
    %v687 = vadd.f32 %v349, %v686
    %v688 = vpop.f32.mrb[0].mxu0
    %v689 = vadd.f32 %v345, %v688
    %v690 = vpop.f32.mrb[0].mxu0
    %v691 = vadd.f32 %v349, %v690
    %692 = vmatprep.mubr.bf16.mxu0 %v484
    %693 = vmatmul.mubr.bf16.gmra.mrb[0].mxu0 %v249
    %v694 = vpop.f32.mrb[0].mxu0
    %v695 = vadd.f32 %v345, %v694
    %v696 = vpop.f32.mrb[0].mxu0
    %v697 = vadd.f32 %v349, %v696
    %v698 = vpop.f32.mrb[0].mxu0
    %v699 = vadd.f32 %v345, %v698
    %v700 = vpop.f32.mrb[0].mxu0
    %v701 = vadd.f32 %v349, %v700
    %702 = vmatprep.mubr.bf16.mxu0 %v487
    %703 = vmatmul.mubr.bf16.gmra.mrb[0].mxu0 %v256
    %v704 = vpop.f32.mrb[0].mxu0
    %v705 = vadd.f32 %v345, %v704
    %v706 = vpop.f32.mrb[0].mxu0
    %v707 = vadd.f32 %v349, %v706
    %v708 = vpop.f32.mrb[0].mxu0
    %v709 = vadd.f32 %v345, %v708
    %v710 = vpop.f32.mrb[0].mxu0
    %v711 = vadd.f32 %v349, %v710
    %712 = vmatprep.mubr.bf16.mxu0 %v490
    %713 = vmatmul.mubr.bf16.gmra.mrb[0].mxu0 %v265
    %v714 = vpop.f32.mrb[0].mxu0
    %v715 = vadd.f32 %v345, %v714
    %v716 = vpop.f32.mrb[0].mxu0
    %v717 = vadd.f32 %v349, %v716
    %v718 = vpop.f32.mrb[0].mxu0
    %v719 = vadd.f32 %v345, %v718
    %v720 = vpop.f32.mrb[0].mxu0
    %v721 = vadd.f32 %v349, %v720
    %722 = vmatprep.mubr.bf16.mxu0 %v493
    %723 = vmatmul.mubr.bf16.gmra.mrb[0].mxu0 %v273
    %v724 = vpop.f32.mrb[0].mxu0
    %v725 = vadd.f32 %v345, %v724
    %v726 = vpop.f32.mrb[0].mxu0
    %v727 = vadd.f32 %v349, %v726
    %v728 = vpop.f32.mrb[0].mxu0
    %v729 = vadd.f32 %v345, %v728
    %v730 = vpop.f32.mrb[0].mxu0
    %v731 = vadd.f32 %v349, %v730
    %732 = vmatprep.mubr.bf16.mxu0 %v496
    %733 = vmatmul.mubr.bf16.gmra.mrb[0].mxu0 %v280
    %v734 = vpop.f32.mrb[0].mxu0
    %v735 = vadd.f32 %v345, %v734
    %v736 = vpop.f32.mrb[0].mxu0
    %v737 = vadd.f32 %v349, %v736
    %v738 = vpop.f32.mrb[0].mxu0
    %v739 = vadd.f32 %v345, %v738
    %v740 = vpop.f32.mrb[0].mxu0
    %v741 = vadd.f32 %v349, %v740
    %742 = vmatprep.mubr.bf16.mxu0 %v499
    %743 = vmatmul.mubr.bf16.gmra.mrb[0].mxu0 %v287
    %v744 = vpop.f32.mrb[0].mxu0
    %v745 = vadd.f32 %v345, %v744
    %v746 = vpop.f32.mrb[0].mxu0
    %v747 = vadd.f32 %v349, %v746
    %v748 = vpop.f32.mrb[0].mxu0
    %v749 = vadd.f32 %v345, %v748
    %v750 = vpop.f32.mrb[0].mxu0
    %v751 = vadd.f32 %v349, %v750
    %752 = vmatprep.mubr.bf16.mxu0 %v502
    %753 = vmatmul.mubr.bf16.gmra.mrb[0].mxu0 %v294
    %v754 = vpop.f32.mrb[0].mxu0
    %v755 = vadd.f32 %v345, %v754
    %v756 = vpop.f32.mrb[0].mxu0
    %v757 = vadd.f32 %v349, %v756
    %v758 = vpop.f32.mrb[0].mxu0
    %v759 = vadd.f32 %v345, %v758
    %v760 = vpop.f32.mrb[0].mxu0
    %v761 = vadd.f32 %v349, %v760
    %762 = vmatprep.mubr.bf16.mxu0 %v505
    %763 = vmatmul.mubr.bf16.gmra.mrb[0].mxu0 %v301
    %v764 = vpop.f32.mrb[0].mxu0
    %v765 = vadd.f32 %v345, %v764
    %v766 = vpop.f32.mrb[0].mxu0
    %v767 = vadd.f32 %v349, %v766
    %v768 = vpop.f32.mrb[0].mxu0
    %v769 = vadd.f32 %v345, %v768
    %v770 = vpop.f32.mrb[0].mxu0
    %v771 = vadd.f32 %v349, %v770
    %772 = vmatprep.mubr.bf16.mxu0 %v508
    %773 = vmatmul.mubr.bf16.gmra.mrb[0].mxu0 %v308
    %v774 = vpop.f32.mrb[0].mxu0
    %v775 = vadd.f32 %v345, %v774
    %v776 = vpop.f32.mrb[0].mxu0
    %v777 = vadd.f32 %v349, %v776
    %v778 = vpop.f32.mrb[0].mxu0
    %v779 = vadd.f32 %v345, %v778
    %v780 = vpop.f32.mrb[0].mxu0
    %v781 = vadd.f32 %v349, %v780
    %782 = vmatprep.mubr.bf16.mxu0 %v511
    %783 = vmatmul.mubr.bf16.gmra.mrb[0].mxu0 %v320
    %v784 = vpop.f32.mrb[0].mxu0
    %v785 = vadd.f32 %v345, %v784
    %v786 = vpop.f32.mrb[0].mxu0
    %v787 = vadd.f32 %v349, %v786
    %v788 = vpop.f32.mrb[0].mxu0
    %v789 = vadd.f32 %v345, %v788
    %v790 = vpop.f32.mrb[0].mxu0
    %v791 = vadd.f32 %v349, %v790
    %792 = vdwg.mxu0
    %v793 = vmax.f32 %v555, %v557
    %v794 = vmax.f32 %v559, %v561
    %v795 = vmax.f32 %v565, %v567
    %v796 = vmax.f32 %v569, %v571
    %v797 = vmax.f32 %v575, %v577
    %v798 = vmax.f32 %v579, %v581
    %v799 = vmax.f32 %v585, %v587
    %v800 = vmax.f32 %v589, %v591
    %v801 = vmax.f32 %v595, %v597
    %v802 = vmax.f32 %v599, %v601
    %v803 = vmax.f32 %v605, %v607
    %v804 = vmax.f32 %v609, %v611
    %v805 = vmax.f32 %v615, %v617
    %v806 = vmax.f32 %v619, %v621
    %v807 = vmax.f32 %v625, %v627
    %v808 = vmax.f32 %v629, %v631
    %v809 = vmax.f32 %v635, %v637
    %v810 = vmax.f32 %v639, %v641
    %v811 = vmax.f32 %v645, %v647
    %v812 = vmax.f32 %v649, %v651
    %v813 = vmax.f32 %v655, %v657
    %v814 = vmax.f32 %v659, %v661
    %v815 = vmax.f32 %v665, %v667
    %v816 = vmax.f32 %v669, %v671
    %v817 = vmax.f32 %v675, %v677
    %v818 = vmax.f32 %v679, %v681
    %v819 = vmax.f32 %v685, %v687
    %v820 = vmax.f32 %v689, %v691
    %v821 = vmax.f32 %v695, %v697
    %v822 = vmax.f32 %v699, %v701
    %v823 = vmax.f32 %v705, %v707
    %v824 = vmax.f32 %v709, %v711
    %v825 = vmax.f32 %v715, %v717
    %v826 = vmax.f32 %v719, %v721
    %v827 = vmax.f32 %v725, %v727
    %v828 = vmax.f32 %v729, %v731
    %v829 = vmax.f32 %v735, %v737
    %v830 = vmax.f32 %v739, %v741
    %v831 = vmax.f32 %v745, %v747
    %v832 = vmax.f32 %v749, %v751
    %v833 = vmax.f32 %v755, %v757
    %v834 = vmax.f32 %v759, %v761
    %v835 = vmax.f32 %v765, %v767
    %v836 = vmax.f32 %v769, %v771
    %v837 = vmax.f32 %v775, %v777
    %v838 = vmax.f32 %v779, %v781
    %v839 = vmax.f32 %v785, %v787
    %v840 = vmax.f32 %v789, %v791
    %v841 = vmax.f32 %v793, %v817
    %v842 = vmax.f32 %v794, %v818
    %v843 = vmax.f32 %v795, %v819
    %v844 = vmax.f32 %v796, %v820
    %v845 = vmax.f32 %v797, %v821
    %v846 = vmax.f32 %v798, %v822
    %v847 = vmax.f32 %v799, %v823
    %v848 = vmax.f32 %v800, %v824
    %v849 = vmax.f32 %v801, %v825
    %v850 = vmax.f32 %v802, %v826
    %v851 = vmax.f32 %v803, %v827
    %v852 = vmax.f32 %v804, %v828
    %v853 = vmax.f32 %v805, %v829
    %v854 = vmax.f32 %v806, %v830
    %v855 = vmax.f32 %v807, %v831
    %v856 = vmax.f32 %v808, %v832
    %v857 = vmax.f32 %v809, %v833
    %v858 = vmax.f32 %v810, %v834
    %v859 = vmax.f32 %v811, %v835
    %v860 = vmax.f32 %v812, %v836
    %v861 = vmax.f32 %v813, %v837
    %v862 = vmax.f32 %v814, %v838
    %v863 = vmax.f32 %v815, %v839
    %v864 = vmax.f32 %v816, %v840
    %vm865 = vcmp.gt.f32.partialorder %v841, 0.0
    %vm866 = vcmp.gt.f32.partialorder %v842, 0.0
    %vm867 = vcmp.gt.f32.partialorder %v843, 0.0
    %vm868 = vcmp.gt.f32.partialorder %v844, 0.0
    %vm869 = vcmp.gt.f32.partialorder %v845, 0.0
    %vm870 = vcmp.gt.f32.partialorder %v846, 0.0
    %vm871 = vcmp.gt.f32.partialorder %v847, 0.0
    %vm872 = vcmp.gt.f32.partialorder %v848, 0.0
    %vm873 = vcmp.gt.f32.partialorder %v849, 0.0
    %vm874 = vcmp.gt.f32.partialorder %v850, 0.0
    %vm875 = vcmp.gt.f32.partialorder %v851, 0.0
    %vm876 = vcmp.gt.f32.partialorder %v852, 0.0
    %vm877 = vcmp.gt.f32.partialorder %v853, 0.0
    %vm878 = vcmp.gt.f32.partialorder %v854, 0.0
    %vm879 = vcmp.gt.f32.partialorder %v855, 0.0
    %vm880 = vcmp.gt.f32.partialorder %v856, 0.0
    %vm881 = vcmp.gt.f32.partialorder %v857, 0.0
    %vm882 = vcmp.gt.f32.partialorder %v858, 0.0
    %vm883 = vcmp.gt.f32.partialorder %v859, 0.0
    %vm884 = vcmp.gt.f32.partialorder %v860, 0.0
    %vm885 = vcmp.gt.f32.partialorder %v861, 0.0
    %vm886 = vcmp.gt.f32.partialorder %v862, 0.0
    %vm887 = vcmp.gt.f32.partialorder %v863, 0.0
    %vm888 = vcmp.gt.f32.partialorder %v864, 0.0
    %v889 = vmul.f32 %v841, 0.1
    %v890 = vmul.f32 %v842, 0.1
    %v891 = vmul.f32 %v843, 0.1
    %v892 = vmul.f32 %v844, 0.1
    %v893 = vmul.f32 %v845, 0.1
    %v894 = vmul.f32 %v846, 0.1
    %v895 = vmul.f32 %v847, 0.1
    %v896 = vmul.f32 %v848, 0.1
    %v897 = vmul.f32 %v849, 0.1
    %v898 = vmul.f32 %v850, 0.1
    %v899 = vmul.f32 %v851, 0.1
    %v900 = vmul.f32 %v852, 0.1
    %v901 = vmul.f32 %v853, 0.1
    %v902 = vmul.f32 %v854, 0.1
    %v903 = vmul.f32 %v855, 0.1
    %v904 = vmul.f32 %v856, 0.1
    %v905 = vmul.f32 %v857, 0.1
    %v906 = vmul.f32 %v858, 0.1
    %v907 = vmul.f32 %v859, 0.1
    %v908 = vmul.f32 %v860, 0.1
    %v909 = vmul.f32 %v861, 0.1
    %v910 = vmul.f32 %v862, 0.1
    %v911 = vmul.f32 %v863, 0.1
    %v912 = vmul.f32 %v864, 0.1
    %v913 = vsel %vm865, %v841, %v889
    %v914 = vsel %vm866, %v842, %v890
    %v915 = vsel %vm867, %v843, %v891
    %v916 = vsel %vm868, %v844, %v892
    %v917 = vsel %vm869, %v845, %v893
    %v918 = vsel %vm870, %v846, %v894
    %v919 = vsel %vm871, %v847, %v895
    %v920 = vsel %vm872, %v848, %v896
    %v921 = vsel %vm873, %v849, %v897
    %v922 = vsel %vm874, %v850, %v898
    %v923 = vsel %vm875, %v851, %v899
    %v924 = vsel %vm876, %v852, %v900
    %v925 = vsel %vm877, %v853, %v901
    %v926 = vsel %vm878, %v854, %v902
    %v927 = vsel %vm879, %v855, %v903
    %v928 = vsel %vm880, %v856, %v904
    %v929 = vsel %vm881, %v857, %v905
    %v930 = vsel %vm882, %v858, %v906
    %v931 = vsel %vm883, %v859, %v907
    %v932 = vsel %vm884, %v860, %v908
    %v933 = vsel %vm885, %v861, %v909
    %v934 = vsel %vm886, %v862, %v910
    %v935 = vsel %vm887, %v863, %v911
    %v936 = vsel %vm888, %v864, %v912
    %v937 = vpack.c.bf16 %v914, %v913
    %v938 = vpack.c.bf16 %v916, %v915
    %v939 = vpack.c.bf16 %v918, %v917
    %v940 = vpack.c.bf16 %v920, %v919
    %v941 = vpack.c.bf16 %v922, %v921
    %v942 = vpack.c.bf16 %v924, %v923
    %v943 = vpack.c.bf16 %v926, %v925
    %v944 = vpack.c.bf16 %v928, %v927
    %v945 = vpack.c.bf16 %v930, %v929
    %v946 = vpack.c.bf16 %v932, %v931
    %v947 = vpack.c.bf16 %v934, %v933
    %v948 = vpack.c.bf16 %v936, %v935
    %v949 = vld [vmem:[#allocation8] sm:$0xf]
    %v950 = vld [vmem:[#allocation8 + $0x4] sm:$0xf]
    %v951 = vld [vmem:[#allocation8 + $0x8] sm:$0xf]
    %v952 = vld [vmem:[#allocation8 + $0xc] sm:$0xf]
    %v953 = vld [vmem:[#allocation8 + $0x10] sm:$0xf]
    %v954 = vld [vmem:[#allocation8 + $0x14] sm:$0xf]
    %v955 = vld [vmem:[#allocation8 + $0x18] sm:$0xf]
    %v956 = vld [vmem:[#allocation8 + $0x1c] sm:$0xf]
    %v957 = vld [vmem:[#allocation8 + $0x20] sm:$0xf]
    %v958 = vld [vmem:[#allocation8 + $0x24] sm:$0xf]
    %v959 = vld [vmem:[#allocation8 + $0x28] sm:$0xf]
    %v960 = vld [vmem:[#allocation8 + $0x2c] sm:$0xf]
    %v961 = vld [vmem:[#allocation8 + $0x30] sm:$0xf]
    %v962 = vld [vmem:[#allocation8 + $0x34] sm:$0xf]
    %v963 = vld [vmem:[#allocation8 + $0x38] sm:$0xf]
    %v964 = vld [vmem:[#allocation8 + $0x3c] sm:$0xf]
    %v965 = vld [vmem:[#allocation8 + $0x40] sm:$0xf]
    %v966 = vld [vmem:[#allocation8 + $0x44] sm:$0xf]
    %v967 = vld [vmem:[#allocation8 + $0x48] sm:$0xf]
    %v968 = vld [vmem:[#allocation8 + $0x4c] sm:$0xf]
    %v969 = vld [vmem:[#allocation8 + $0x50] sm:$0xf]
    %v970 = vld [vmem:[#allocation8 + $0x54] sm:$0xf]
    %v971 = vld [vmem:[#allocation8 + $0x58] sm:$0xf]
    %v972 = vld [vmem:[#allocation8 + $0x5c] sm:$0xf]
    %v973 = vld [vmem:[#allocation8 + $0x60] sm:$0xf]
    %v974 = vld [vmem:[#allocation8 + $0x64] sm:$0xf]
    %v975 = vld [vmem:[#allocation8 + $0x68] sm:$0xf]
    %v976 = vld [vmem:[#allocation8 + $0x6c] sm:$0xf]
    %v977 = vld [vmem:[#allocation8 + $0x70] sm:$0xf]
    %v978 = vld [vmem:[#allocation8 + $0x74] sm:$0xf]
    %v979 = vld [vmem:[#allocation8 + $0x78] sm:$0xf]
    %v980 = vld [vmem:[#allocation8 + $0x7c] sm:$0xf]
    %v981 = vld [vmem:[#allocation8 + $0x80] sm:$0xf]
    %v982 = vld [vmem:[#allocation8 + $0x84] sm:$0xf]
    %v983 = vld [vmem:[#allocation8 + $0x88] sm:$0xf]
    %v984 = vld [vmem:[#allocation8 + $0x8c] sm:$0xf]
    %v985 = vld [vmem:[#allocation8 + $0x90] sm:$0xf]
    %v986 = vld [vmem:[#allocation8 + $0x94] sm:$0xf]
    %v987 = vld [vmem:[#allocation8 + $0x98] sm:$0xf]
    %v988 = vld [vmem:[#allocation8 + $0x9c] sm:$0xf]
    %v989 = vld [vmem:[#allocation8 + $0xa0] sm:$0xf]
    %v990 = vld [vmem:[#allocation8 + $0xa4] sm:$0xf]
    %v991 = vld [vmem:[#allocation8 + $0xa8] sm:$0xf]
    %v992 = vld [vmem:[#allocation8 + $0xac] sm:$0xf]
    %v993 = vld [vmem:[#allocation8 + $0xb0] sm:$0xf]
    %v994 = vld [vmem:[#allocation8 + $0xb4] sm:$0xf]
    %v995 = vld [vmem:[#allocation8 + $0xb8] sm:$0xf]
    %v996 = vld [vmem:[#allocation8 + $0xbc] sm:$0xf]
    %v997 = vld [vmem:[#allocation8 + $0xc0] sm:$0xf]
    %v998 = vld [vmem:[#allocation8 + $0xc4] sm:$0xf]
    %v999 = vld [vmem:[#allocation8 + $0xc8] sm:$0xf]
    %v1000 = vld [vmem:[#allocation8 + $0xcc] sm:$0xf]
    %v1001 = vld [vmem:[#allocation8 + $0xd0] sm:$0xf]
    %v1002 = vld [vmem:[#allocation8 + $0xd4] sm:$0xf]
    %v1003 = vld [vmem:[#allocation8 + $0xd8] sm:$0xf]
    %v1004 = vld [vmem:[#allocation8 + $0xdc] sm:$0xf]
    %v1005 = vld [vmem:[#allocation8 + $0xe0] sm:$0xf]
    %v1006 = vld [vmem:[#allocation8 + $0xe4] sm:$0xf]
    %v1007 = vld [vmem:[#allocation8 + $0xe8] sm:$0xf]
    %v1008 = vld [vmem:[#allocation8 + $0xec] sm:$0xf]
    %v1009 = vld [vmem:[#allocation8 + $0xf0] sm:$0xf]
    %v1010 = vld [vmem:[#allocation8 + $0xf4] sm:$0xf]
    %v1011 = vld [vmem:[#allocation8 + $0xf8] sm:$0xf]
    %v1012 = vld [vmem:[#allocation8 + $0xfc] sm:$0xf]
    %v1013 = vld [vmem:[#allocation8 + $0x100] sm:$0xf]
    %v1014 = vld [vmem:[#allocation8 + $0x104] sm:$0xf]
    %v1015 = vld [vmem:[#allocation8 + $0x108] sm:$0xf]
    %v1016 = vld [vmem:[#allocation8 + $0x10c] sm:$0xf]
    %v1017 = vld [vmem:[#allocation8 + $0x110] sm:$0xf]
    %v1018 = vld [vmem:[#allocation8 + $0x114] sm:$0xf]
    %v1019 = vld [vmem:[#allocation8 + $0x118] sm:$0xf]
    %v1020 = vld [vmem:[#allocation8 + $0x11c] sm:$0xf]
    %v1021 = vld [vmem:[#allocation8 + $0x120] sm:$0xf]
    %v1022 = vld [vmem:[#allocation8 + $0x124] sm:$0xf]
    %v1023 = vld [vmem:[#allocation8 + $0x128] sm:$0xf]
    %v1024 = vld [vmem:[#allocation8 + $0x12c] sm:$0xf]
    %v1025 = vld [vmem:[#allocation8 + $0x130] sm:$0xf]
    %v1026 = vld [vmem:[#allocation8 + $0x134] sm:$0xf]
    %v1027 = vld [vmem:[#allocation8 + $0x138] sm:$0xf]
    %v1028 = vld [vmem:[#allocation8 + $0x13c] sm:$0xf]
    %v1029 = vld [vmem:[#allocation10] sm:$0x1]
    %v1046 = vunpack.c.l.b16 %v949
    %v1047 = vunpack.c.l.b16 %v950
    %v1048 = vunpack.c.l.b16 %v951
    %v1049 = vunpack.c.l.b16 %v952
    %v1050 = vunpack.c.l.b16 %v953
    %v1051 = vunpack.c.l.b16 %v954
    %v1052 = vunpack.c.l.b16 %v955
    %v1053 = vunpack.c.l.b16 %v956
    %v1054 = vunpack.c.l.b16 %v957
    %v1055 = vunpack.c.l.b16 %v958
    %v1056 = vunpack.c.l.b16 %v959
    %v1057 = vunpack.c.l.b16 %v960
    %v1058 = vunpack.c.l.b16 %v961
    %v1059 = vunpack.c.l.b16 %v962
    %v1060 = vunpack.c.l.b16 %v963
    %v1061 = vunpack.c.l.b16 %v964
    %v1062 = vpack.c.b16 %v1047, %v1046
    %v1063 = vpack.c.b16 %v1049, %v1048
    %v1064 = vpack.c.b16 %v1051, %v1050
    %v1065 = vpack.c.b16 %v1053, %v1052
    %v1066 = vpack.c.b16 %v1055, %v1054
    %v1067 = vpack.c.b16 %v1057, %v1056
    %v1068 = vpack.c.b16 %v1059, %v1058
    %v1069 = vpack.c.b16 %v1061, %v1060
    %1078 = vmatprep.subr.bf16.mxu0 0
    %1079 = vmatpush1.bf16.msra.mxu0 %v1062
    %1080 = vmatprep.subr.bf16.mxu0 0
    %1081 = vmatpush1.bf16.msra.mxu0 %v1063
    %1082 = vmatprep.subr.bf16.mxu0 0
    %1083 = vmatpush1.bf16.msra.mxu0 %v1064
    %1084 = vmatprep.subr.bf16.mxu0 0
    %1085 = vmatpush1.bf16.msra.mxu0 %v1065
    %1086 = vmatprep.subr.bf16.mxu0 0
    %1087 = vmatpush1.bf16.msra.mxu0 %v1066
    %1088 = vmatprep.subr.bf16.mxu0 0
    %1089 = vmatpush1.bf16.msra.mxu0 %v1067
    %1090 = vmatprep.subr.bf16.mxu0 0
    %1091 = vmatpush1.bf16.msra.mxu0 %v1068
    %1092 = vmatprep.subr.bf16.mxu0 0
    %1093 = vmatpush1.bf16.msra.mxu0 %v1069
    %1094 = vmatprep.subr.bf16.mxu0 0
    %1095 = vmatpush1.bf16.msra.mxu0 0
    %1096 = vmatprep.subr.bf16.mxu0 0
    %1097 = vmatpush1.bf16.msra.mxu0 0
    %1098 = vmatprep.subr.bf16.mxu0 0
    %1099 = vmatpush1.bf16.msra.mxu0 0
    %1100 = vmatprep.subr.bf16.mxu0 0
    %1101 = vmatpush1.bf16.msra.mxu0 0
    %1102 = vmatprep.subr.bf16.mxu0 0
    %1103 = vmatpush1.bf16.msra.mxu0 0
    %1104 = vmatprep.subr.bf16.mxu0 0
    %1105 = vmatpush1.bf16.msra.mxu0 0
    %1106 = vmatprep.subr.bf16.mxu0 0
    %1107 = vmatpush1.bf16.msra.mxu0 0
    %1108 = vmatprep.subr.bf16.mxu0 0
    %1109 = vmatpush1.bf16.msra.mxu0 0
    %1110 = vmatprep.mubr.bf16.mxu0 0
    %1111 = vmatmul.mubr.bf16.gmra.mrb[0].mxu0 %v937
    %v1112 = vpop.f32.mrb[0].mxu0
    %v1113 = vadd.f32 0.0, %v1112
    %v1114 = vpop.f32.mrb[0].mxu0
    %v1115 = vpop.f32.mrb[0].mxu0
    %v1116 = vadd.f32 0.0, %v1115
    %v1117 = vpop.f32.mrb[0].mxu0
    %1118 = vmatprep.mubr.bf16.mxu0 0
    %1119 = vmatmul.mubr.bf16.gmra.mrb[0].mxu0 %v938
    %v1120 = vpop.f32.mrb[0].mxu0
    %v1121 = vadd.f32 0.0, %v1120
    %v1122 = vpop.f32.mrb[0].mxu0
    %v1123 = vpop.f32.mrb[0].mxu0
    %v1124 = vadd.f32 0.0, %v1123
    %v1125 = vpop.f32.mrb[0].mxu0
    %1126 = vmatprep.mubr.bf16.mxu0 0
    %1127 = vmatmul.mubr.bf16.gmra.mrb[0].mxu0 %v939
    %v1128 = vpop.f32.mrb[0].mxu0
    %v1129 = vadd.f32 0.0, %v1128
    %v1130 = vpop.f32.mrb[0].mxu0
    %v1131 = vpop.f32.mrb[0].mxu0
    %v1132 = vadd.f32 0.0, %v1131
    %v1133 = vpop.f32.mrb[0].mxu0
    %1134 = vmatprep.mubr.bf16.mxu0 0
    %1135 = vmatmul.mubr.bf16.gmra.mrb[0].mxu0 %v940
    %v1136 = vpop.f32.mrb[0].mxu0
    %v1137 = vadd.f32 0.0, %v1136
    %v1138 = vpop.f32.mrb[0].mxu0
    %v1139 = vpop.f32.mrb[0].mxu0
    %v1140 = vadd.f32 0.0, %v1139
    %v1141 = vpop.f32.mrb[0].mxu0
    %1142 = vmatprep.mubr.bf16.mxu0 0
    %1143 = vmatmul.mubr.bf16.gmra.mrb[0].mxu0 %v941
    %v1144 = vpop.f32.mrb[0].mxu0
    %v1145 = vadd.f32 0.0, %v1144
    %v1146 = vpop.f32.mrb[0].mxu0
    %v1147 = vpop.f32.mrb[0].mxu0
    %v1148 = vadd.f32 0.0, %v1147
    %v1149 = vpop.f32.mrb[0].mxu0
    %1150 = vmatprep.mubr.bf16.mxu0 0
    %1151 = vmatmul.mubr.bf16.gmra.mrb[0].mxu0 %v942
    %v1152 = vpop.f32.mrb[0].mxu0
    %v1153 = vadd.f32 0.0, %v1152
    %v1154 = vpop.f32.mrb[0].mxu0
    %v1155 = vpop.f32.mrb[0].mxu0
    %v1156 = vadd.f32 0.0, %v1155
    %v1157 = vpop.f32.mrb[0].mxu0
    %1158 = vmatprep.mubr.bf16.mxu0 0
    %1159 = vmatmul.mubr.bf16.gmra.mrb[0].mxu0 %v943
    %v1160 = vpop.f32.mrb[0].mxu0
    %v1161 = vadd.f32 0.0, %v1160
    %v1162 = vpop.f32.mrb[0].mxu0
    %v1163 = vpop.f32.mrb[0].mxu0
    %v1164 = vadd.f32 0.0, %v1163
    %v1165 = vpop.f32.mrb[0].mxu0
    %1166 = vmatprep.mubr.bf16.mxu0 0
    %1167 = vmatmul.mubr.bf16.gmra.mrb[0].mxu0 %v944
    %v1168 = vpop.f32.mrb[0].mxu0
    %v1169 = vadd.f32 0.0, %v1168
    %v1170 = vpop.f32.mrb[0].mxu0
    %v1171 = vpop.f32.mrb[0].mxu0
    %v1172 = vadd.f32 0.0, %v1171
    %v1173 = vpop.f32.mrb[0].mxu0
    %1174 = vdwg.mxu0
    %v1176 = vlaneseq
    %v1177 = vshrl.u32 %v1176, 7
    %v1178 = vsub.s32 0, %v1177
    %v1179 = vrot.slane %v1029, %v1178
    %v1181 = vadd.f32 %v1179, %v1113
    %v1182 = vadd.f32 %v1179, %v1116
    %v1183 = vadd.f32 %v1179, %v1121
    %v1184 = vadd.f32 %v1179, %v1124
    %v1185 = vadd.f32 %v1179, %v1129
    %v1186 = vadd.f32 %v1179, %v1132
    %v1187 = vadd.f32 %v1179, %v1137
    %v1188 = vadd.f32 %v1179, %v1140
    %v1189 = vadd.f32 %v1179, %v1145
    %v1190 = vadd.f32 %v1179, %v1148
    %v1191 = vadd.f32 %v1179, %v1153
    %v1192 = vadd.f32 %v1179, %v1156
    %v1193 = vadd.f32 %v1179, %v1161
    %v1194 = vadd.f32 %v1179, %v1164
    %v1195 = vadd.f32 %v1179, %v1169
    %v1196 = vadd.f32 %v1179, %v1172
    %v1213 = vunpack.c.l.b16 %v965
    %v1214 = vunpack.c.l.b16 %v966
    %v1215 = vunpack.c.l.b16 %v967
    %v1216 = vunpack.c.l.b16 %v968
    %v1217 = vunpack.c.l.b16 %v969
    %v1218 = vunpack.c.l.b16 %v970
    %v1219 = vunpack.c.l.b16 %v971
    %v1220 = vunpack.c.l.b16 %v972
    %v1221 = vunpack.c.l.b16 %v973
    %v1222 = vunpack.c.l.b16 %v974
    %v1223 = vunpack.c.l.b16 %v975
    %v1224 = vunpack.c.l.b16 %v976
    %v1225 = vunpack.c.l.b16 %v977
    %v1226 = vunpack.c.l.b16 %v978
    %v1227 = vunpack.c.l.b16 %v979
    %v1228 = vunpack.c.l.b16 %v980
    %v1229 = vpack.c.b16 %v1214, %v1213
    %v1230 = vpack.c.b16 %v1216, %v1215
    %v1231 = vpack.c.b16 %v1218, %v1217
    %v1232 = vpack.c.b16 %v1220, %v1219
    %v1233 = vpack.c.b16 %v1222, %v1221
    %v1234 = vpack.c.b16 %v1224, %v1223
    %v1235 = vpack.c.b16 %v1226, %v1225
    %v1236 = vpack.c.b16 %v1228, %v1227
    %1245 = vmatprep.subr.bf16.mxu0 0
    %1246 = vmatpush1.bf16.msra.mxu0 %v1229
    %1247 = vmatprep.subr.bf16.mxu0 0
    %1248 = vmatpush1.bf16.msra.mxu0 %v1230
    %1249 = vmatprep.subr.bf16.mxu0 0
    %1250 = vmatpush1.bf16.msra.mxu0 %v1231
    %1251 = vmatprep.subr.bf16.mxu0 0
    %1252 = vmatpush1.bf16.msra.mxu0 %v1232
    %1253 = vmatprep.subr.bf16.mxu0 0
    %1254 = vmatpush1.bf16.msra.mxu0 %v1233
    %1255 = vmatprep.subr.bf16.mxu0 0
    %1256 = vmatpush1.bf16.msra.mxu0 %v1234
    %1257 = vmatprep.subr.bf16.mxu0 0
    %1258 = vmatpush1.bf16.msra.mxu0 %v1235
    %1259 = vmatprep.subr.bf16.mxu0 0
    %1260 = vmatpush1.bf16.msra.mxu0 %v1236
    %1261 = vmatprep.subr.bf16.mxu0 0
    %1262 = vmatpush1.bf16.msra.mxu0 0
    %1263 = vmatprep.subr.bf16.mxu0 0
    %1264 = vmatpush1.bf16.msra.mxu0 0
    %1265 = vmatprep.subr.bf16.mxu0 0
    %1266 = vmatpush1.bf16.msra.mxu0 0
    %1267 = vmatprep.subr.bf16.mxu0 0
    %1268 = vmatpush1.bf16.msra.mxu0 0
    %1269 = vmatprep.subr.bf16.mxu0 0
    %1270 = vmatpush1.bf16.msra.mxu0 0
    %1271 = vmatprep.subr.bf16.mxu0 0
    %1272 = vmatpush1.bf16.msra.mxu0 0
    %1273 = vmatprep.subr.bf16.mxu0 0
    %1274 = vmatpush1.bf16.msra.mxu0 0
    %1275 = vmatprep.subr.bf16.mxu0 0
    %1276 = vmatpush1.bf16.msra.mxu0 0
    %1277 = vmatprep.mubr.bf16.mxu0 0
    %1278 = vmatmul.mubr.bf16.gmra.mrb[0].mxu0 %v938
    %v1279 = vpop.f32.mrb[0].mxu0
    %v1280 = vadd.f32 0.0, %v1279
    %v1281 = vpop.f32.mrb[0].mxu0
    %v1282 = vpop.f32.mrb[0].mxu0
    %v1283 = vadd.f32 0.0, %v1282
    %v1284 = vpop.f32.mrb[0].mxu0
    %1285 = vmatprep.mubr.bf16.mxu0 0
    %1286 = vmatmul.mubr.bf16.gmra.mrb[0].mxu0 %v939
    %v1287 = vpop.f32.mrb[0].mxu0
    %v1288 = vadd.f32 0.0, %v1287
    %v1289 = vpop.f32.mrb[0].mxu0
    %v1290 = vpop.f32.mrb[0].mxu0
    %v1291 = vadd.f32 0.0, %v1290
    %v1292 = vpop.f32.mrb[0].mxu0
    %1293 = vmatprep.mubr.bf16.mxu0 0
    %1294 = vmatmul.mubr.bf16.gmra.mrb[0].mxu0 %v940
    %v1295 = vpop.f32.mrb[0].mxu0
    %v1296 = vadd.f32 0.0, %v1295
    %v1297 = vpop.f32.mrb[0].mxu0
    %v1298 = vpop.f32.mrb[0].mxu0
    %v1299 = vadd.f32 0.0, %v1298
    %v1300 = vpop.f32.mrb[0].mxu0
    %1301 = vmatprep.mubr.bf16.mxu0 0
    %1302 = vmatmul.mubr.bf16.gmra.mrb[0].mxu0 %v941
    %v1303 = vpop.f32.mrb[0].mxu0
    %v1304 = vadd.f32 0.0, %v1303
    %v1305 = vpop.f32.mrb[0].mxu0
    %v1306 = vpop.f32.mrb[0].mxu0
    %v1307 = vadd.f32 0.0, %v1306
    %v1308 = vpop.f32.mrb[0].mxu0
    %1309 = vmatprep.mubr.bf16.mxu0 0
    %1310 = vmatmul.mubr.bf16.gmra.mrb[0].mxu0 %v942
    %v1311 = vpop.f32.mrb[0].mxu0
    %v1312 = vadd.f32 0.0, %v1311
    %v1313 = vpop.f32.mrb[0].mxu0
    %v1314 = vpop.f32.mrb[0].mxu0
    %v1315 = vadd.f32 0.0, %v1314
    %v1316 = vpop.f32.mrb[0].mxu0
    %1317 = vmatprep.mubr.bf16.mxu0 0
    %1318 = vmatmul.mubr.bf16.gmra.mrb[0].mxu0 %v943
    %v1319 = vpop.f32.mrb[0].mxu0
    %v1320 = vadd.f32 0.0, %v1319
    %v1321 = vpop.f32.mrb[0].mxu0
    %v1322 = vpop.f32.mrb[0].mxu0
    %v1323 = vadd.f32 0.0, %v1322
    %v1324 = vpop.f32.mrb[0].mxu0
    %1325 = vmatprep.mubr.bf16.mxu0 0
    %1326 = vmatmul.mubr.bf16.gmra.mrb[0].mxu0 %v944
    %v1327 = vpop.f32.mrb[0].mxu0
    %v1328 = vadd.f32 0.0, %v1327
    %v1329 = vpop.f32.mrb[0].mxu0
    %v1330 = vpop.f32.mrb[0].mxu0
    %v1331 = vadd.f32 0.0, %v1330
    %v1332 = vpop.f32.mrb[0].mxu0
    %1333 = vmatprep.mubr.bf16.mxu0 0
    %1334 = vmatmul.mubr.bf16.gmra.mrb[0].mxu0 %v945
    %v1335 = vpop.f32.mrb[0].mxu0
    %v1336 = vadd.f32 0.0, %v1335
    %v1337 = vpop.f32.mrb[0].mxu0
    %v1338 = vpop.f32.mrb[0].mxu0
    %v1339 = vadd.f32 0.0, %v1338
    %v1340 = vpop.f32.mrb[0].mxu0
    %1341 = vdwg.mxu0
    %v1342 = vadd.f32 %v1181, %v1280
    %v1343 = vadd.f32 %v1182, %v1283
    %v1344 = vadd.f32 %v1183, %v1288
    %v1345 = vadd.f32 %v1184, %v1291
    %v1346 = vadd.f32 %v1185, %v1296
    %v1347 = vadd.f32 %v1186, %v1299
    %v1348 = vadd.f32 %v1187, %v1304
    %v1349 = vadd.f32 %v1188, %v1307
    %v1350 = vadd.f32 %v1189, %v1312
    %v1351 = vadd.f32 %v1190, %v1315
    %v1352 = vadd.f32 %v1191, %v1320
    %v1353 = vadd.f32 %v1192, %v1323
    %v1354 = vadd.f32 %v1193, %v1328
    %v1355 = vadd.f32 %v1194, %v1331
    %v1356 = vadd.f32 %v1195, %v1336
    %v1357 = vadd.f32 %v1196, %v1339
    %v1374 = vunpack.c.l.b16 %v981
    %v1375 = vunpack.c.l.b16 %v982
    %v1376 = vunpack.c.l.b16 %v983
    %v1377 = vunpack.c.l.b16 %v984
    %v1378 = vunpack.c.l.b16 %v985
    %v1379 = vunpack.c.l.b16 %v986
    %v1380 = vunpack.c.l.b16 %v987
    %v1381 = vunpack.c.l.b16 %v988
    %v1382 = vunpack.c.l.b16 %v989
    %v1383 = vunpack.c.l.b16 %v990
    %v1384 = vunpack.c.l.b16 %v991
    %v1385 = vunpack.c.l.b16 %v992
    %v1386 = vunpack.c.l.b16 %v993
    %v1387 = vunpack.c.l.b16 %v994
    %v1388 = vunpack.c.l.b16 %v995
    %v1389 = vunpack.c.l.b16 %v996
    %v1390 = vpack.c.b16 %v1375, %v1374
    %v1391 = vpack.c.b16 %v1377, %v1376
    %v1392 = vpack.c.b16 %v1379, %v1378
    %v1393 = vpack.c.b16 %v1381, %v1380
    %v1394 = vpack.c.b16 %v1383, %v1382
    %v1395 = vpack.c.b16 %v1385, %v1384
    %v1396 = vpack.c.b16 %v1387, %v1386
    %v1397 = vpack.c.b16 %v1389, %v1388
    %1406 = vmatprep.subr.bf16.mxu0 0
    %1407 = vmatpush1.bf16.msra.mxu0 %v1390
    %1408 = vmatprep.subr.bf16.mxu0 0
    %1409 = vmatpush1.bf16.msra.mxu0 %v1391
    %1410 = vmatprep.subr.bf16.mxu0 0
    %1411 = vmatpush1.bf16.msra.mxu0 %v1392
    %1412 = vmatprep.subr.bf16.mxu0 0
    %1413 = vmatpush1.bf16.msra.mxu0 %v1393
    %1414 = vmatprep.subr.bf16.mxu0 0
    %1415 = vmatpush1.bf16.msra.mxu0 %v1394
    %1416 = vmatprep.subr.bf16.mxu0 0
    %1417 = vmatpush1.bf16.msra.mxu0 %v1395
    %1418 = vmatprep.subr.bf16.mxu0 0
    %1419 = vmatpush1.bf16.msra.mxu0 %v1396
    %1420 = vmatprep.subr.bf16.mxu0 0
    %1421 = vmatpush1.bf16.msra.mxu0 %v1397
    %1422 = vmatprep.subr.bf16.mxu0 0
    %1423 = vmatpush1.bf16.msra.mxu0 0
    %1424 = vmatprep.subr.bf16.mxu0 0
    %1425 = vmatpush1.bf16.msra.mxu0 0
    %1426 = vmatprep.subr.bf16.mxu0 0
    %1427 = vmatpush1.bf16.msra.mxu0 0
    %1428 = vmatprep.subr.bf16.mxu0 0
    %1429 = vmatpush1.bf16.msra.mxu0 0
    %1430 = vmatprep.subr.bf16.mxu0 0
    %1431 = vmatpush1.bf16.msra.mxu0 0
    %1432 = vmatprep.subr.bf16.mxu0 0
    %1433 = vmatpush1.bf16.msra.mxu0 0
    %1434 = vmatprep.subr.bf16.mxu0 0
    %1435 = vmatpush1.bf16.msra.mxu0 0
    %1436 = vmatprep.subr.bf16.mxu0 0
    %1437 = vmatpush1.bf16.msra.mxu0 0
    %1438 = vmatprep.mubr.bf16.mxu0 0
    %1439 = vmatmul.mubr.bf16.gmra.mrb[0].mxu0 %v939
    %v1440 = vpop.f32.mrb[0].mxu0
    %v1441 = vadd.f32 0.0, %v1440
    %v1442 = vpop.f32.mrb[0].mxu0
    %v1443 = vpop.f32.mrb[0].mxu0
    %v1444 = vadd.f32 0.0, %v1443
    %v1445 = vpop.f32.mrb[0].mxu0
    %1446 = vmatprep.mubr.bf16.mxu0 0
    %1447 = vmatmul.mubr.bf16.gmra.mrb[0].mxu0 %v940
    %v1448 = vpop.f32.mrb[0].mxu0
    %v1449 = vadd.f32 0.0, %v1448
    %v1450 = vpop.f32.mrb[0].mxu0
    %v1451 = vpop.f32.mrb[0].mxu0
    %v1452 = vadd.f32 0.0, %v1451
    %v1453 = vpop.f32.mrb[0].mxu0
    %1454 = vmatprep.mubr.bf16.mxu0 0
    %1455 = vmatmul.mubr.bf16.gmra.mrb[0].mxu0 %v941
    %v1456 = vpop.f32.mrb[0].mxu0
    %v1457 = vadd.f32 0.0, %v1456
    %v1458 = vpop.f32.mrb[0].mxu0
    %v1459 = vpop.f32.mrb[0].mxu0
    %v1460 = vadd.f32 0.0, %v1459
    %v1461 = vpop.f32.mrb[0].mxu0
    %1462 = vmatprep.mubr.bf16.mxu0 0
    %1463 = vmatmul.mubr.bf16.gmra.mrb[0].mxu0 %v942
    %v1464 = vpop.f32.mrb[0].mxu0
    %v1465 = vadd.f32 0.0, %v1464
    %v1466 = vpop.f32.mrb[0].mxu0
    %v1467 = vpop.f32.mrb[0].mxu0
    %v1468 = vadd.f32 0.0, %v1467
    %v1469 = vpop.f32.mrb[0].mxu0
    %1470 = vmatprep.mubr.bf16.mxu0 0
    %1471 = vmatmul.mubr.bf16.gmra.mrb[0].mxu0 %v943
    %v1472 = vpop.f32.mrb[0].mxu0
    %v1473 = vadd.f32 0.0, %v1472
    %v1474 = vpop.f32.mrb[0].mxu0
    %v1475 = vpop.f32.mrb[0].mxu0
    %v1476 = vadd.f32 0.0, %v1475
    %v1477 = vpop.f32.mrb[0].mxu0
    %1478 = vmatprep.mubr.bf16.mxu0 0
    %1479 = vmatmul.mubr.bf16.gmra.mrb[0].mxu0 %v944
    %v1480 = vpop.f32.mrb[0].mxu0
    %v1481 = vadd.f32 0.0, %v1480
    %v1482 = vpop.f32.mrb[0].mxu0
    %v1483 = vpop.f32.mrb[0].mxu0
    %v1484 = vadd.f32 0.0, %v1483
    %v1485 = vpop.f32.mrb[0].mxu0
    %1486 = vmatprep.mubr.bf16.mxu0 0
    %1487 = vmatmul.mubr.bf16.gmra.mrb[0].mxu0 %v945
    %v1488 = vpop.f32.mrb[0].mxu0
    %v1489 = vadd.f32 0.0, %v1488
    %v1490 = vpop.f32.mrb[0].mxu0
    %v1491 = vpop.f32.mrb[0].mxu0
    %v1492 = vadd.f32 0.0, %v1491
    %v1493 = vpop.f32.mrb[0].mxu0
    %1494 = vmatprep.mubr.bf16.mxu0 0
    %1495 = vmatmul.mubr.bf16.gmra.mrb[0].mxu0 %v946
    %v1496 = vpop.f32.mrb[0].mxu0
    %v1497 = vadd.f32 0.0, %v1496
    %v1498 = vpop.f32.mrb[0].mxu0
    %v1499 = vpop.f32.mrb[0].mxu0
    %v1500 = vadd.f32 0.0, %v1499
    %v1501 = vpop.f32.mrb[0].mxu0
    %1502 = vdwg.mxu0
    %v1503 = vadd.f32 %v1342, %v1441
    %v1504 = vadd.f32 %v1343, %v1444
    %v1505 = vadd.f32 %v1344, %v1449
    %v1506 = vadd.f32 %v1345, %v1452
    %v1507 = vadd.f32 %v1346, %v1457
    %v1508 = vadd.f32 %v1347, %v1460
    %v1509 = vadd.f32 %v1348, %v1465
    %v1510 = vadd.f32 %v1349, %v1468
    %v1511 = vadd.f32 %v1350, %v1473
    %v1512 = vadd.f32 %v1351, %v1476
    %v1513 = vadd.f32 %v1352, %v1481
    %v1514 = vadd.f32 %v1353, %v1484
    %v1515 = vadd.f32 %v1354, %v1489
    %v1516 = vadd.f32 %v1355, %v1492
    %v1517 = vadd.f32 %v1356, %v1497
    %v1518 = vadd.f32 %v1357, %v1500
    %v1535 = vunpack.c.l.b16 %v997
    %v1536 = vunpack.c.l.b16 %v998
    %v1537 = vunpack.c.l.b16 %v999
    %v1538 = vunpack.c.l.b16 %v1000
    %v1539 = vunpack.c.l.b16 %v1001
    %v1540 = vunpack.c.l.b16 %v1002
    %v1541 = vunpack.c.l.b16 %v1003
    %v1542 = vunpack.c.l.b16 %v1004
    %v1543 = vunpack.c.l.b16 %v1005
    %v1544 = vunpack.c.l.b16 %v1006
    %v1545 = vunpack.c.l.b16 %v1007
    %v1546 = vunpack.c.l.b16 %v1008
    %v1547 = vunpack.c.l.b16 %v1009
    %v1548 = vunpack.c.l.b16 %v1010
    %v1549 = vunpack.c.l.b16 %v1011
    %v1550 = vunpack.c.l.b16 %v1012
    %v1551 = vpack.c.b16 %v1536, %v1535
    %v1552 = vpack.c.b16 %v1538, %v1537
    %v1553 = vpack.c.b16 %v1540, %v1539
    %v1554 = vpack.c.b16 %v1542, %v1541
    %v1555 = vpack.c.b16 %v1544, %v1543
    %v1556 = vpack.c.b16 %v1546, %v1545
    %v1557 = vpack.c.b16 %v1548, %v1547
    %v1558 = vpack.c.b16 %v1550, %v1549
    %1567 = vmatprep.subr.bf16.mxu0 0
    %1568 = vmatpush1.bf16.msra.mxu0 %v1551
    %1569 = vmatprep.subr.bf16.mxu0 0
    %1570 = vmatpush1.bf16.msra.mxu0 %v1552
    %1571 = vmatprep.subr.bf16.mxu0 0
    %1572 = vmatpush1.bf16.msra.mxu0 %v1553
    %1573 = vmatprep.subr.bf16.mxu0 0
    %1574 = vmatpush1.bf16.msra.mxu0 %v1554
    %1575 = vmatprep.subr.bf16.mxu0 0
    %1576 = vmatpush1.bf16.msra.mxu0 %v1555
    %1577 = vmatprep.subr.bf16.mxu0 0
    %1578 = vmatpush1.bf16.msra.mxu0 %v1556
    %1579 = vmatprep.subr.bf16.mxu0 0
    %1580 = vmatpush1.bf16.msra.mxu0 %v1557
    %1581 = vmatprep.subr.bf16.mxu0 0
    %1582 = vmatpush1.bf16.msra.mxu0 %v1558
    %1583 = vmatprep.subr.bf16.mxu0 0
    %1584 = vmatpush1.bf16.msra.mxu0 0
    %1585 = vmatprep.subr.bf16.mxu0 0
    %1586 = vmatpush1.bf16.msra.mxu0 0
    %1587 = vmatprep.subr.bf16.mxu0 0
    %1588 = vmatpush1.bf16.msra.mxu0 0
    %1589 = vmatprep.subr.bf16.mxu0 0
    %1590 = vmatpush1.bf16.msra.mxu0 0
    %1591 = vmatprep.subr.bf16.mxu0 0
    %1592 = vmatpush1.bf16.msra.mxu0 0
    %1593 = vmatprep.subr.bf16.mxu0 0
    %1594 = vmatpush1.bf16.msra.mxu0 0
    %1595 = vmatprep.subr.bf16.mxu0 0
    %1596 = vmatpush1.bf16.msra.mxu0 0
    %1597 = vmatprep.subr.bf16.mxu0 0
    %1598 = vmatpush1.bf16.msra.mxu0 0
    %1599 = vmatprep.mubr.bf16.mxu0 0
    %1600 = vmatmul.mubr.bf16.gmra.mrb[0].mxu0 %v940
    %v1601 = vpop.f32.mrb[0].mxu0
    %v1602 = vadd.f32 0.0, %v1601
    %v1603 = vpop.f32.mrb[0].mxu0
    %v1604 = vpop.f32.mrb[0].mxu0
    %v1605 = vadd.f32 0.0, %v1604
    %v1606 = vpop.f32.mrb[0].mxu0
    %1607 = vmatprep.mubr.bf16.mxu0 0
    %1608 = vmatmul.mubr.bf16.gmra.mrb[0].mxu0 %v941
    %v1609 = vpop.f32.mrb[0].mxu0
    %v1610 = vadd.f32 0.0, %v1609
    %v1611 = vpop.f32.mrb[0].mxu0
    %v1612 = vpop.f32.mrb[0].mxu0
    %v1613 = vadd.f32 0.0, %v1612
    %v1614 = vpop.f32.mrb[0].mxu0
    %1615 = vmatprep.mubr.bf16.mxu0 0
    %1616 = vmatmul.mubr.bf16.gmra.mrb[0].mxu0 %v942
    %v1617 = vpop.f32.mrb[0].mxu0
    %v1618 = vadd.f32 0.0, %v1617
    %v1619 = vpop.f32.mrb[0].mxu0
    %v1620 = vpop.f32.mrb[0].mxu0
    %v1621 = vadd.f32 0.0, %v1620
    %v1622 = vpop.f32.mrb[0].mxu0
    %1623 = vmatprep.mubr.bf16.mxu0 0
    %1624 = vmatmul.mubr.bf16.gmra.mrb[0].mxu0 %v943
    %v1625 = vpop.f32.mrb[0].mxu0
    %v1626 = vadd.f32 0.0, %v1625
    %v1627 = vpop.f32.mrb[0].mxu0
    %v1628 = vpop.f32.mrb[0].mxu0
    %v1629 = vadd.f32 0.0, %v1628
    %v1630 = vpop.f32.mrb[0].mxu0
    %1631 = vmatprep.mubr.bf16.mxu0 0
    %1632 = vmatmul.mubr.bf16.gmra.mrb[0].mxu0 %v944
    %v1633 = vpop.f32.mrb[0].mxu0
    %v1634 = vadd.f32 0.0, %v1633
    %v1635 = vpop.f32.mrb[0].mxu0
    %v1636 = vpop.f32.mrb[0].mxu0
    %v1637 = vadd.f32 0.0, %v1636
    %v1638 = vpop.f32.mrb[0].mxu0
    %1639 = vmatprep.mubr.bf16.mxu0 0
    %1640 = vmatmul.mubr.bf16.gmra.mrb[0].mxu0 %v945
    %v1641 = vpop.f32.mrb[0].mxu0
    %v1642 = vadd.f32 0.0, %v1641
    %v1643 = vpop.f32.mrb[0].mxu0
    %v1644 = vpop.f32.mrb[0].mxu0
    %v1645 = vadd.f32 0.0, %v1644
    %v1646 = vpop.f32.mrb[0].mxu0
    %1647 = vmatprep.mubr.bf16.mxu0 0
    %1648 = vmatmul.mubr.bf16.gmra.mrb[0].mxu0 %v946
    %v1649 = vpop.f32.mrb[0].mxu0
    %v1650 = vadd.f32 0.0, %v1649
    %v1651 = vpop.f32.mrb[0].mxu0
    %v1652 = vpop.f32.mrb[0].mxu0
    %v1653 = vadd.f32 0.0, %v1652
    %v1654 = vpop.f32.mrb[0].mxu0
    %1655 = vmatprep.mubr.bf16.mxu0 0
    %1656 = vmatmul.mubr.bf16.gmra.mrb[0].mxu0 %v947
    %v1657 = vpop.f32.mrb[0].mxu0
    %v1658 = vadd.f32 0.0, %v1657
    %v1659 = vpop.f32.mrb[0].mxu0
    %v1660 = vpop.f32.mrb[0].mxu0
    %v1661 = vadd.f32 0.0, %v1660
    %v1662 = vpop.f32.mrb[0].mxu0
    %1663 = vdwg.mxu0
    %v1664 = vadd.f32 %v1503, %v1602
    %v1665 = vadd.f32 %v1504, %v1605
    %v1666 = vadd.f32 %v1505, %v1610
    %v1667 = vadd.f32 %v1506, %v1613
    %v1668 = vadd.f32 %v1507, %v1618
    %v1669 = vadd.f32 %v1508, %v1621
    %v1670 = vadd.f32 %v1509, %v1626
    %v1671 = vadd.f32 %v1510, %v1629
    %v1672 = vadd.f32 %v1511, %v1634
    %v1673 = vadd.f32 %v1512, %v1637
    %v1674 = vadd.f32 %v1513, %v1642
    %v1675 = vadd.f32 %v1514, %v1645
    %v1676 = vadd.f32 %v1515, %v1650
    %v1677 = vadd.f32 %v1516, %v1653
    %v1678 = vadd.f32 %v1517, %v1658
    %v1679 = vadd.f32 %v1518, %v1661
    %v1696 = vunpack.c.l.b16 %v1013
    %v1697 = vunpack.c.l.b16 %v1014
    %v1698 = vunpack.c.l.b16 %v1015
    %v1699 = vunpack.c.l.b16 %v1016
    %v1700 = vunpack.c.l.b16 %v1017
    %v1701 = vunpack.c.l.b16 %v1018
    %v1702 = vunpack.c.l.b16 %v1019
    %v1703 = vunpack.c.l.b16 %v1020
    %v1704 = vunpack.c.l.b16 %v1021
    %v1705 = vunpack.c.l.b16 %v1022
    %v1706 = vunpack.c.l.b16 %v1023
    %v1707 = vunpack.c.l.b16 %v1024
    %v1708 = vunpack.c.l.b16 %v1025
    %v1709 = vunpack.c.l.b16 %v1026
    %v1710 = vunpack.c.l.b16 %v1027
    %v1711 = vunpack.c.l.b16 %v1028
    %v1712 = vpack.c.b16 %v1697, %v1696
    %v1713 = vpack.c.b16 %v1699, %v1698
    %v1714 = vpack.c.b16 %v1701, %v1700
    %v1715 = vpack.c.b16 %v1703, %v1702
    %v1716 = vpack.c.b16 %v1705, %v1704
    %v1717 = vpack.c.b16 %v1707, %v1706
    %v1718 = vpack.c.b16 %v1709, %v1708
    %v1719 = vpack.c.b16 %v1711, %v1710
    %1728 = vmatprep.subr.bf16.mxu0 0
    %1729 = vmatpush1.bf16.msra.mxu0 %v1712
    %1730 = vmatprep.subr.bf16.mxu0 0
    %1731 = vmatpush1.bf16.msra.mxu0 %v1713
    %1732 = vmatprep.subr.bf16.mxu0 0
    %1733 = vmatpush1.bf16.msra.mxu0 %v1714
    %1734 = vmatprep.subr.bf16.mxu0 0
    %1735 = vmatpush1.bf16.msra.mxu0 %v1715
    %1736 = vmatprep.subr.bf16.mxu0 0
    %1737 = vmatpush1.bf16.msra.mxu0 %v1716
    %1738 = vmatprep.subr.bf16.mxu0 0
    %1739 = vmatpush1.bf16.msra.mxu0 %v1717
    %1740 = vmatprep.subr.bf16.mxu0 0
    %1741 = vmatpush1.bf16.msra.mxu0 %v1718
    %1742 = vmatprep.subr.bf16.mxu0 0
    %1743 = vmatpush1.bf16.msra.mxu0 %v1719
    %1744 = vmatprep.subr.bf16.mxu0 0
    %1745 = vmatpush1.bf16.msra.mxu0 0
    %1746 = vmatprep.subr.bf16.mxu0 0
    %1747 = vmatpush1.bf16.msra.mxu0 0
    %1748 = vmatprep.subr.bf16.mxu0 0
    %1749 = vmatpush1.bf16.msra.mxu0 0
    %1750 = vmatprep.subr.bf16.mxu0 0
    %1751 = vmatpush1.bf16.msra.mxu0 0
    %1752 = vmatprep.subr.bf16.mxu0 0
    %1753 = vmatpush1.bf16.msra.mxu0 0
    %1754 = vmatprep.subr.bf16.mxu0 0
    %1755 = vmatpush1.bf16.msra.mxu0 0
    %1756 = vmatprep.subr.bf16.mxu0 0
    %1757 = vmatpush1.bf16.msra.mxu0 0
    %1758 = vmatprep.subr.bf16.mxu0 0
    %1759 = vmatpush1.bf16.msra.mxu0 0
    %1760 = vmatprep.mubr.bf16.mxu0 0
    %1761 = vmatmul.mubr.bf16.gmra.mrb[0].mxu0 %v941
    %v1762 = vpop.f32.mrb[0].mxu0
    %v1763 = vadd.f32 0.0, %v1762
    %v1764 = vpop.f32.mrb[0].mxu0
    %v1765 = vpop.f32.mrb[0].mxu0
    %v1766 = vadd.f32 0.0, %v1765
    %v1767 = vpop.f32.mrb[0].mxu0
    %1768 = vmatprep.mubr.bf16.mxu0 0
    %1769 = vmatmul.mubr.bf16.gmra.mrb[0].mxu0 %v942
    %v1770 = vpop.f32.mrb[0].mxu0
    %v1771 = vadd.f32 0.0, %v1770
    %v1772 = vpop.f32.mrb[0].mxu0
    %v1773 = vpop.f32.mrb[0].mxu0
    %v1774 = vadd.f32 0.0, %v1773
    %v1775 = vpop.f32.mrb[0].mxu0
    %1776 = vmatprep.mubr.bf16.mxu0 0
    %1777 = vmatmul.mubr.bf16.gmra.mrb[0].mxu0 %v943
    %v1778 = vpop.f32.mrb[0].mxu0
    %v1779 = vadd.f32 0.0, %v1778
    %v1780 = vpop.f32.mrb[0].mxu0
    %v1781 = vpop.f32.mrb[0].mxu0
    %v1782 = vadd.f32 0.0, %v1781
    %v1783 = vpop.f32.mrb[0].mxu0
    %1784 = vmatprep.mubr.bf16.mxu0 0
    %1785 = vmatmul.mubr.bf16.gmra.mrb[0].mxu0 %v944
    %v1786 = vpop.f32.mrb[0].mxu0
    %v1787 = vadd.f32 0.0, %v1786
    %v1788 = vpop.f32.mrb[0].mxu0
    %v1789 = vpop.f32.mrb[0].mxu0
    %v1790 = vadd.f32 0.0, %v1789
    %v1791 = vpop.f32.mrb[0].mxu0
    %1792 = vmatprep.mubr.bf16.mxu0 0
    %1793 = vmatmul.mubr.bf16.gmra.mrb[0].mxu0 %v945
    %v1794 = vpop.f32.mrb[0].mxu0
    %v1795 = vadd.f32 0.0, %v1794
    %v1796 = vpop.f32.mrb[0].mxu0
    %v1797 = vpop.f32.mrb[0].mxu0
    %v1798 = vadd.f32 0.0, %v1797
    %v1799 = vpop.f32.mrb[0].mxu0
    %1800 = vmatprep.mubr.bf16.mxu0 0
    %1801 = vmatmul.mubr.bf16.gmra.mrb[0].mxu0 %v946
    %v1802 = vpop.f32.mrb[0].mxu0
    %v1803 = vadd.f32 0.0, %v1802
    %v1804 = vpop.f32.mrb[0].mxu0
    %v1805 = vpop.f32.mrb[0].mxu0
    %v1806 = vadd.f32 0.0, %v1805
    %v1807 = vpop.f32.mrb[0].mxu0
    %1808 = vmatprep.mubr.bf16.mxu0 0
    %1809 = vmatmul.mubr.bf16.gmra.mrb[0].mxu0 %v947
    %v1810 = vpop.f32.mrb[0].mxu0
    %v1811 = vadd.f32 0.0, %v1810
    %v1812 = vpop.f32.mrb[0].mxu0
    %v1813 = vpop.f32.mrb[0].mxu0
    %v1814 = vadd.f32 0.0, %v1813
    %v1815 = vpop.f32.mrb[0].mxu0
    %1816 = vmatprep.mubr.bf16.mxu0 0
    %1817 = vmatmul.mubr.bf16.gmra.mrb[0].mxu0 %v948
    %v1818 = vpop.f32.mrb[0].mxu0
    %v1819 = vadd.f32 0.0, %v1818
    %v1820 = vpop.f32.mrb[0].mxu0
    %v1821 = vpop.f32.mrb[0].mxu0
    %v1822 = vadd.f32 0.0, %v1821
    %v1823 = vpop.f32.mrb[0].mxu0
    %1824 = vdwg.mxu0
    %v1825 = vadd.f32 %v1664, %v1763
    %v1826 = vadd.f32 %v1665, %v1766
    %v1827 = vadd.f32 %v1666, %v1771
    %v1828 = vadd.f32 %v1667, %v1774
    %v1829 = vadd.f32 %v1668, %v1779
    %v1830 = vadd.f32 %v1669, %v1782
    %v1831 = vadd.f32 %v1670, %v1787
    %v1832 = vadd.f32 %v1671, %v1790
    %v1833 = vadd.f32 %v1672, %v1795
    %v1834 = vadd.f32 %v1673, %v1798
    %v1835 = vadd.f32 %v1674, %v1803
    %v1836 = vadd.f32 %v1675, %v1806
    %v1837 = vadd.f32 %v1676, %v1811
    %v1838 = vadd.f32 %v1677, %v1814
    %v1839 = vadd.f32 %v1678, %v1819
    %v1840 = vadd.f32 %v1679, %v1822
    %v1841 = vmax.f32 %v1825, %v1827
    %v1842 = vmax.f32 %v1826, %v1828
    %v1843 = vmax.f32 %v1829, %v1831
    %v1844 = vmax.f32 %v1830, %v1832
    %v1845 = vmax.f32 %v1833, %v1835
    %v1846 = vmax.f32 %v1834, %v1836
    %v1847 = vmax.f32 %v1837, %v1839
    %v1848 = vmax.f32 %v1838, %v1840
    %1857 = vrot.lane.b32.xlu0 %v1841, 112
    %v1858 = vpop.permute.xlu0 %1857
    %1859 = vrot.lane.b32.xlu0 %v1842, 112
    %v1860 = vpop.permute.xlu0 %1859
    %1861 = vrot.lane.b32.xlu0 %v1843, 112
    %v1862 = vpop.permute.xlu0 %1861
    %1863 = vrot.lane.b32.xlu0 %v1844, 112
    %v1864 = vpop.permute.xlu0 %1863
    %1865 = vrot.lane.b32.xlu0 %v1845, 112
    %v1866 = vpop.permute.xlu0 %1865
    %1867 = vrot.lane.b32.xlu0 %v1846, 112
    %v1868 = vpop.permute.xlu0 %1867
    %1869 = vrot.lane.b32.xlu0 %v1847, 112
    %v1870 = vpop.permute.xlu0 %1869
    %1871 = vrot.lane.b32.xlu0 %v1848, 112
    %v1872 = vpop.permute.xlu0 %1871
    %v1881 = vmax.f32 %v1841, %v1858
    %v1882 = vmax.f32 %v1842, %v1860
    %v1883 = vmax.f32 %v1843, %v1862
    %v1884 = vmax.f32 %v1844, %v1864
    %v1885 = vmax.f32 %v1845, %v1866
    %v1886 = vmax.f32 %v1846, %v1868
    %v1887 = vmax.f32 %v1847, %v1870
    %v1888 = vmax.f32 %v1848, %v1872
    %vm1889 = vcmp.gt.f32.partialorder %v1881, 0.0
    %vm1890 = vcmp.gt.f32.partialorder %v1882, 0.0
    %vm1891 = vcmp.gt.f32.partialorder %v1883, 0.0
    %vm1892 = vcmp.gt.f32.partialorder %v1884, 0.0
    %vm1893 = vcmp.gt.f32.partialorder %v1885, 0.0
    %vm1894 = vcmp.gt.f32.partialorder %v1886, 0.0
    %vm1895 = vcmp.gt.f32.partialorder %v1887, 0.0
    %vm1896 = vcmp.gt.f32.partialorder %v1888, 0.0
    %v1897 = vmul.f32 %v1881, 0.1
    %v1898 = vmul.f32 %v1882, 0.1
    %v1899 = vmul.f32 %v1883, 0.1
    %v1900 = vmul.f32 %v1884, 0.1
    %v1901 = vmul.f32 %v1885, 0.1
    %v1902 = vmul.f32 %v1886, 0.1
    %v1903 = vmul.f32 %v1887, 0.1
    %v1904 = vmul.f32 %v1888, 0.1
    %v1905 = vsel %vm1889, %v1881, %v1897
    %v1906 = vsel %vm1890, %v1882, %v1898
    %v1907 = vsel %vm1891, %v1883, %v1899
    %v1908 = vsel %vm1892, %v1884, %v1900
    %v1909 = vsel %vm1893, %v1885, %v1901
    %v1910 = vsel %vm1894, %v1886, %v1902
    %v1911 = vsel %vm1895, %v1887, %v1903
    %v1912 = vsel %vm1896, %v1888, %v1904
    %1915 = vrot.lane.b32.xlu0 %v1907, 16
    %v1916 = vpop.permute.xlu0 %1915
    %1917 = vrot.lane.b32.xlu0 %v1908, 16
    %v1918 = vpop.permute.xlu0 %1917
    %1923 = vrot.lane.b32.xlu0 %v1909, 32
    %v1924 = vpop.permute.xlu0 %1923
    %1925 = vrot.lane.b32.xlu0 %v1910, 32
    %v1926 = vpop.permute.xlu0 %1925
    %1931 = vrot.lane.b32.xlu0 %v1911, 48
    %v1932 = vpop.permute.xlu0 %1931
    %1933 = vrot.lane.b32.xlu0 %v1912, 48
    %v1934 = vpop.permute.xlu0 %1933
    %vm1937 = vcmask 130048
    %v1938 = vsel %vm1937, %v1905, %v1916
    %v1939 = vsel %vm1937, %v1906, %v1918
    %vm1940 = vcmask 261120
    %v1941 = vsel %vm1940, %v1938, %v1924
    %v1942 = vsel %vm1940, %v1939, %v1926
    %vm1943 = vcmask 392192
    %v1944 = vsel %vm1943, %v1941, %v1932
    %v1945 = vsel %vm1943, %v1942, %v1934
    %v1946 = vld [vmem:[#allocation11] sm:$0xff]
    %v1947 = vld [vmem:[#allocation11 + $0x8] sm:$0xff]
    %v1948 = vld [vmem:[#allocation11 + $0x10] sm:$0xff]
    %v1949 = vld [vmem:[#allocation11 + $0x18] sm:$0xff]
    %v1950 = vld [vmem:[#allocation11 + $0x20] sm:$0xff]
    %v1951 = vld [vmem:[#allocation11 + $0x28] sm:$0xff]
    %v1952 = vld [vmem:[#allocation11 + $0x30] sm:$0xff]
    %v1953 = vld [vmem:[#allocation11 + $0x38] sm:$0xff]
    %v1954 = vld [vmem:[#allocation13] sm:$0x1]
    %v1956 = vlaneseq
    %v1957 = vshrl.u32 %v1956, 7
    %v1958 = vsub.s32 0, %v1957
    %v1959 = vrot.slane %v1954, %v1958
    %vm1961 = vcmask 523264
    %v1963 = vsel %vm1961, %v1944, 0
    %v1966 = vsel %vm1961, %v1945, 0
    %1968 = vmatprep.subr.mxu0 0.0
    %1969 = vmatpush1.msra.mxu0 %v1946
    %1970 = vmatprep.subr.mxu0 0.0
    %1971 = vmatpush1.msra.mxu0 %v1947
    %1972 = vmatprep.subr.mxu0 0.0
    %1973 = vmatpush1.msra.mxu0 %v1948
    %1974 = vmatprep.subr.mxu0 0.0
    %1975 = vmatpush1.msra.mxu0 %v1949
    %1976 = vmatprep.subr.mxu0 0.0
    %1977 = vmatpush1.msra.mxu0 %v1950
    %1978 = vmatprep.subr.mxu0 0.0
    %1979 = vmatpush1.msra.mxu0 %v1951
    %1980 = vmatprep.subr.mxu0 0.0
    %1981 = vmatpush1.msra.mxu0 %v1952
    %1982 = vmatprep.subr.mxu0 0.0
    %1983 = vmatpush1.msra.mxu0 %v1953
    %1984 = vmatprep.subr.mxu0 0.0
    %1985 = vmatpush1.msra.mxu0 0.0
    %1986 = vmatprep.subr.mxu0 0.0
    %1987 = vmatpush1.msra.mxu0 0.0
    %1988 = vmatprep.subr.mxu0 0.0
    %1989 = vmatpush1.msra.mxu0 0.0
    %1990 = vmatprep.subr.mxu0 0.0
    %1991 = vmatpush1.msra.mxu0 0.0
    %1992 = vmatprep.subr.mxu0 0.0
    %1993 = vmatpush1.msra.mxu0 0.0
    %1994 = vmatprep.subr.mxu0 0.0
    %1995 = vmatpush1.msra.mxu0 0.0
    %1996 = vmatprep.subr.mxu0 0.0
    %1997 = vmatpush1.msra.mxu0 0.0
    %1998 = vmatprep.subr.mxu0 0.0
    %1999 = vmatpush1.msra.mxu0 0.0
    %2000 = vmatprep.subr.mxu0 0.0
    %2001 = vmatpush1.msra.mxu0 0.0
    %2002 = vmatprep.subr.mxu0 0.0
    %2003 = vmatpush1.msra.mxu0 0.0
    %2004 = vmatprep.subr.mxu0 0.0
    %2005 = vmatpush1.msra.mxu0 0.0
    %2006 = vmatprep.subr.mxu0 0.0
    %2007 = vmatpush1.msra.mxu0 0.0
    %2008 = vmatprep.subr.mxu0 0.0
    %2009 = vmatpush1.msra.mxu0 0.0
    %2010 = vmatprep.subr.mxu0 0.0
    %2011 = vmatpush1.msra.mxu0 0.0
    %2012 = vmatprep.subr.mxu0 0.0
    %2013 = vmatpush1.msra.mxu0 0.0
    %2014 = vmatprep.subr.mxu0 0.0
    %2015 = vmatpush1.msra.mxu0 0.0
    %2016 = vmatprep.subr.mxu0 0.0
    %2017 = vmatpush1.msra.mxu0 0.0
    %2018 = vmatprep.subr.mxu0 0.0
    %2019 = vmatpush1.msra.mxu0 0.0
    %2020 = vmatprep.subr.mxu0 0.0
    %2021 = vmatpush1.msra.mxu0 0.0
    %2022 = vmatprep.subr.mxu0 0.0
    %2023 = vmatpush1.msra.mxu0 0.0
    %2024 = vmatprep.subr.mxu0 0.0
    %2025 = vmatpush1.msra.mxu0 0.0
    %2026 = vmatprep.subr.mxu0 0.0
    %2027 = vmatpush1.msra.mxu0 0.0
    %2028 = vmatprep.subr.mxu0 0.0
    %2029 = vmatpush1.msra.mxu0 0.0
    %2030 = vmatprep.subr.mxu0 0.0
    %2031 = vmatpush1.msra.mxu0 0.0
    %2032 = vmatprep.mubr.f32.mxu0 0.0
    %2033 = vmatmul.mubr.f32.gmra.mrb[0].mxu0 %v1963
    %v2034 = vpop.f32.mrb[0].mxu0
    %v2035 = vadd.f32 %v1959, %v2034
    %v2036 = vpop.f32.mrb[0].mxu0
    %2037 = vmatprep.mubr.f32.mxu0 0.0
    %2038 = vmatmul.mubr.f32.gmra.mrb[0].mxu0 %v1966
    %v2039 = vpop.f32.mrb[0].mxu0
    %v2040 = vadd.f32 %v1959, %v2039
    %v2041 = vpop.f32.mrb[0].mxu0
    %2042 = vdwg.mxu0
    %2043 = vst.msk [vmem:[#allocation14] sm:$0xff] %vm1940, %v2035
    %2044 = vst.msk [vmem:[#allocation14 + $0x8] sm:$0xff] %vm1940, %v2040
    // Predicated region
    $region58: #{mnist_encoder_dsvdd_forward.1} parent=1 // pred_check
      _
    $region59: #{mnist_encoder_dsvdd_forward.1} parent=1 // pred_check_branch
      %2046 = sbr.rel (0) target = $region61
    $region60: #{mnist_encoder_dsvdd_forward.1} parent=1 // pred_region
      %s2048 = ssub.s32 256, 256
      %2049 = vsyncadd [#allocation4], %s2048
      %s2050 = sshll.u32 [#allocation14], 4
      %s2051 = int_to_ptr.vmem [resolvable:$true] %s2050
      %2056 = dma.vmem_to_hbm [thread:$0]  %s2051, 256, %s7, [#allocation4], 128, 128, 8
    $region61: #{mnist_encoder_dsvdd_forward.1} parent=1 // pred_fallthru
      _
    // Predicated region
    $region62: #{mnist_encoder_dsvdd_forward.1} parent=1 // pred_check
      _
    $region63: #{mnist_encoder_dsvdd_forward.1} parent=1 // pred_check_branch
      %2058 = sbr.rel (0) target = $region65
    $region64: #{mnist_encoder_dsvdd_forward.1} parent=1 // pred_region
      %2059 = dma.done [#allocation4], 256
    $region65: #{mnist_encoder_dsvdd_forward.1} parent=1 // pred_fallthru
      _
    %2060 = vsyncpa [#allocation3], 1
    %2061 = vsyncpa [#allocation6], 1
    %2062 = vsyncpa [#allocation9], 1
    %2063 = vsyncpa [#allocation12], 1
    %2064 = vsyncpa [#allocation4], 1

</llo_original>
